<compile_context>
chip_gen: v5e
topology: v5e:2x2
jax: 0.10.0
libtpu: 0.0.40
codegen_flags: <defaults>
</compile_context>

<pallas_src>
import functools

import jax
import jax.numpy as jnp
from jax.experimental import pallas as pl
from jax.experimental.pallas import tpu as pltpu


def _conv_gn_relu_kernel(x_ref, p_ref, w_ref, b_ref, g_ref, be_ref,
                         m_ref, mt_ref, o_ref, p3_ref, *, width):
    # Shapes (one batch sample per grid step), NCHW flattened over (H, W):
    #   x_ref  : (1, Cx, H*W)      bf16   2x-upsampled x
    #   p_ref  : (1, Cp, H*W)      bf16   prev feature map
    #   w_ref  : (3, Cout, 3*Cin)  bf16   conv weights; K index = dx*Cin + cin
    #   b_ref/g_ref/be_ref : (Cout, 1) f32   conv bias / GN gamma / GN beta
    #   m_ref  : (Cout, G) f32     one-hot channel->group matrix
    #   mt_ref : (G, Cout) f32     its transpose (precomputed)
    #   o_ref  : (1, Cout, H*W)    bf16   fused conv+GN+ReLU output (lane dense)
    #   p3_ref : (3*Cin, (H+2)*W)  bf16   scratch: zero-padded, dx-banded patches
    Cx = x_ref.shape[1]
    Cp = p_ref.shape[1]
    HW = x_ref.shape[2]
    Cin = Cx + Cp
    Cout = o_ref.shape[1]
    G = mt_ref.shape[0]
    W = width
    K3 = 3 * Cin

    # Channel concat [x ; prev] (== torch.cat((x, prev), dim=1)).  Built through
    # f32 so the sublane concat of two 8-row pieces is native-tile aligned, then
    # repacked to bf16 for the MXU.  No concatenated tensor ever hits HBM.
    cat = jnp.concatenate(
        [x_ref[0].astype(jnp.float32), p_ref[0].astype(jnp.float32)],
        axis=0).astype(jnp.bfloat16)                          # (Cin, HW)

    # Per-pixel column coordinate (lane iota): masks the taps that would wrap
    # across image-row boundaries.
    col = jax.lax.broadcasted_iota(jnp.int32, (1, HW), 1) % W
    not_first = col != 0          # valid sources for the dx=2 (right) tap
    not_last = col != (W - 1)     # valid sources for the dx=0 (left) tap

    # ---- zero only the two pad bands the tap stores never fully cover --------
    # (cols [W+1, HW+W-1) are completely overwritten below every grid step, so
    #  no full-scratch zero fill; NOT gated on program_id - unsafe on megacore.)
    zband = jnp.zeros((K3, W + 1), p3_ref.dtype)
    p3_ref[:, pl.ds(0, W + 1)] = zband
    p3_ref[:, pl.ds(HW + W - 1, W + 1)] = zband

    # ---- dx-banded, zero-padded patch matrix ----------------------------------
    # p3[dx*Cin + c, r*W + x] = zero_padded_concat_input[r, x + dx, c]
    # dx = 0 (left tap): column shift +W+1; last column of each image row -> 0
    p3_ref[pl.ds(0, Cin), pl.ds(W + 1, HW)] = (
        jnp.where(not_last, cat, 0).astype(p3_ref.dtype))
    # dx = 1 (center tap): pure column shift +W
    p3_ref[pl.ds(Cin, Cin), pl.ds(W, HW)] = cat
    # dx = 2 (right tap): column shift +W-1; first column of each image row -> 0
    p3_ref[pl.ds(2 * Cin, Cin), pl.ds(W - 1, HW)] = (
        jnp.where(not_first, cat, 0).astype(p3_ref.dtype))

    # ---- 3x3 conv as 3 MXU matmuls with K = 3*Cin ------------------------------
    # (conv bias folded into the GroupNorm affine below; (Cout, HW) f32 acc is
    #  only 16 vregs at these shapes -> no spill, no VMEM acc scratch needed)
    acc = jnp.zeros((Cout, HW), jnp.float32)
    for dy in range(3):
        rhs = p3_ref[:, pl.ds(dy * W, HW)]                    # (3*Cin, HW) bf16
        acc = acc + jnp.dot(w_ref[dy], rhs,
                            preferred_element_type=jnp.float32)

    # ---- GroupNorm statistics in f32 (bias folded analytically) ---------------
    b = b_ref[...]                                            # (Cout, 1)
    row_s = jnp.sum(acc, axis=1, keepdims=True)               # sum of conv (no bias)
    row_q = jnp.sum(acc * acc, axis=1, keepdims=True)         # sum of conv^2
    fhw = float(HW)
    s_b = row_s + fhw * b                                     # stats of conv + bias
    q_b = row_q + 2.0 * b * row_s + fhw * (b * b)
    # Two merged tiny matmuls instead of four serial MXU round-trips.
    grp = jnp.dot(mt_ref[...], jnp.concatenate([s_b, q_b], axis=1),
                  preferred_element_type=jnp.float32)         # (G, 2) = [sum, sumsq]
    cnt = float(HW * (Cout // G))
    mean_g = grp[:, 0:1] / cnt
    var_g = jnp.maximum(grp[:, 1:2] / cnt - mean_g * mean_g, 0.0)
    inv_g = jax.lax.rsqrt(var_g + 1e-5)
    back = jnp.dot(m_ref[...], jnp.concatenate([mean_g, inv_g], axis=1),
                   preferred_element_type=jnp.float32)        # (Cout, 2)
    mean_c = back[:, 0:1]
    inv_c = back[:, 1:2]

    scale = inv_c * g_ref[...]
    shift = (b - mean_c) * scale + be_ref[...]

    # ---- fused affine + ReLU epilogue; lane-dense bf16 store -------------------
    y = jnp.maximum(acc * scale + shift, 0.0)
    o_ref[0] = y.astype(o_ref.dtype)


def _upsample2x_bilinear_nchw(x):
    """Matches nn.Upsample(scale_factor=2, mode='bilinear', align_corners=False).

    Runs in the dtype of `x` (bf16 on the kernel path -> halved HBM intermediate).
    """
    def up1d(a, axis):
        n = a.shape[axis]
        idx = jnp.arange(2 * n, dtype=jnp.float32)
        src = (idx + 0.5) / 2.0 - 0.5
        lo = jnp.floor(src)
        frac = (src - lo).astype(a.dtype)
        lo_i = jnp.clip(lo.astype(jnp.int32), 0, n - 1)
        hi_i = jnp.clip(lo.astype(jnp.int32) + 1, 0, n - 1)
        a_lo = jnp.take(a, lo_i, axis=axis)
        a_hi = jnp.take(a, hi_i, axis=axis)
        shape = [1] * a.ndim
        shape[axis] = 2 * n
        frac = frac.reshape(shape)
        return a_lo * (1 - frac) + a_hi * frac
    return up1d(up1d(x, 2), 3)


def init_params(prev_channel, input_channel, output_channel, key):
    cin = prev_channel + input_channel
    cout = output_channel
    k_w, k_b = jax.random.split(key)
    # Conv2d(cin, cout, 3, padding=1) weight in PyTorch layout (O, I, kH, kW)
    weight = 0.1 * jax.random.normal(k_w, (cout, cin, 3, 3), jnp.float32)
    bias = 0.1 * jax.random.normal(k_b, (cout,), jnp.float32)
    gamma = jnp.ones((cout,), jnp.float32)    # GroupNorm defaults
    beta = jnp.zeros((cout,), jnp.float32)
    # Repack into per-dy (Cout, 3*Cin) matrices: w3t[dy, o, dx*Cin + i].
    w3t = jnp.transpose(weight, (2, 0, 3, 1)).reshape(3, cout, 3 * cin)
    return {
        "w3t": w3t.astype(jnp.bfloat16),        # bf16 MXU operand
        "bias": bias.reshape(cout, 1),
        "gamma": gamma.reshape(cout, 1),
        "beta": beta.reshape(cout, 1),
        "groups": 8,
    }


def unet_up_block(prev_feature_map, x, params, up_sample=True,
                  out_dtype=jnp.float32):
    """NCHW in / NCHW out; same semantics as UNet_up_block_proxy.forward."""
    if up_sample:
        # bf16 upsample: the only materialised upsampled intermediate is bf16.
        x = _upsample2x_bilinear_nchw(x.astype(jnp.bfloat16))
    N, Cx, H, W = x.shape
    Np, Cp, Hp, Wp = prev_feature_map.shape
    assert (N, H, W) == (Np, Hp, Wp)
    Cin = Cx + Cp
    w3t = params["w3t"]
    Cout = w3t.shape[1]
    G = params["groups"]
    gs = Cout // G
    HW = H * W

    # Channel -> group one-hot matrix and its transpose (tiny group reductions).
    M = (jnp.arange(Cout)[:, None] // gs == jnp.arange(G)[None, :]).astype(jnp.float32)
    Mt = jnp.transpose(M)

    # NCHW flattened over (H, W): pure (free) reshapes - no wrapper transposes,
    # no concatenated / padded tensor ever hits HBM.
    x_l = x.reshape(N, Cx, HW).astype(jnp.bfloat16)
    p_l = prev_feature_map.reshape(N, Cp, HW).astype(jnp.bfloat16)

    # VMEM budget: double-buffered in/out blocks + weights/affine + patch scratch,
    # with headroom; capped at 64 MiB so the limit is valid on v7x.
    blk_bytes = 2 * (Cx * HW * 2 + Cp * HW * 2 + Cout * HW * 2)
    fixed_bytes = (3 * Cout * 3 * Cin * 2 + 3 * Cout * 4 + 2 * Cout * G * 4
                   + 3 * Cin * (H + 2) * W * 2)
    vmem_limit = int(min(64 * 1024 * 1024,
                         max(16 * 1024 * 1024, 4 * (blk_bytes + fixed_bytes))))

    kernel = functools.partial(_conv_gn_relu_kernel, width=W)
    out_flat = pl.pallas_call(
        kernel,
        out_shape=jax.ShapeDtypeStruct((N, Cout, HW), jnp.bfloat16),
        grid_spec=pltpu.PrefetchScalarGridSpec(
            num_scalar_prefetch=0,
            grid=(N,),
            in_specs=[
                pl.BlockSpec((1, Cx, HW), lambda n: (n, 0, 0)),
                pl.BlockSpec((1, Cp, HW), lambda n: (n, 0, 0)),
                pl.BlockSpec((3, Cout, 3 * Cin), lambda n: (0, 0, 0)),
                pl.BlockSpec((Cout, 1), lambda n: (0, 0)),     # bias
                pl.BlockSpec((Cout, 1), lambda n: (0, 0)),     # gamma
                pl.BlockSpec((Cout, 1), lambda n: (0, 0)),     # beta
                pl.BlockSpec((Cout, G), lambda n: (0, 0)),     # one-hot M
                pl.BlockSpec((G, Cout), lambda n: (0, 0)),     # M^T
            ],
            out_specs=pl.BlockSpec((1, Cout, HW), lambda n: (n, 0, 0)),
            scratch_shapes=[pltpu.VMEM((3 * Cin, (H + 2) * W), jnp.bfloat16)],
        ),
        compiler_params=pltpu.CompilerParams(
            dimension_semantics=("parallel",),
            vmem_limit_bytes=vmem_limit,
        ),
    )(x_l, p_l, w3t, params["bias"], params["gamma"], params["beta"], M, Mt)

    # (N, Cout, H*W) bf16 is already flattened NCHW: free reshape, no transpose.
    out = out_flat.reshape(N, Cout, H, W)
    # Kernel writeback is bf16 (halved HBM). Cast back only because the module
    # interface is f32; bf16 consumers should pass out_dtype=jnp.bfloat16.
    return out.astype(out_dtype)


def _reference_forward(prev_feature_map, x, params, up_sample=True):
    """Plain-JAX (non-Pallas) reference of the same forward pass (f32 activations)."""
    if up_sample:
        x = _upsample2x_bilinear_nchw(x)
    cat = jnp.concatenate([x, prev_feature_map], axis=1)
    xn = jnp.transpose(cat, (0, 2, 3, 1)).astype(jnp.float32)   # NHWC
    N, H, W, Cin = xn.shape
    Cout = params["w3t"].shape[1]
    # w3t[dy, o, dx*Cin + i]  ->  w4[dy, dx, i, o]
    w4 = jnp.transpose(
        params["w3t"].astype(jnp.float32).reshape(3, Cout, 3, Cin), (0, 2, 3, 1))
    xp = jnp.pad(xn, ((0, 0), (1, 1), (1, 1), (0, 0)))
    acc = jnp.zeros((N, H, W, Cout), jnp.float32)
    for dy in range(3):
        for dx in range(3):
            acc = acc + jnp.einsum('nhwi,io->nhwo',
                                   xp[:, dy:dy + H, dx:dx + W, :], w4[dy, dx])
    acc = acc + params["bias"].reshape(1, 1, 1, Cout)
    G = params["groups"]
    gs = Cout // G
    v = acc.reshape(N, H, W, G, gs)
    mean = jnp.mean(v, axis=(1, 2, 4), keepdims=True)
    var = jnp.mean((v - mean) ** 2, axis=(1, 2, 4), keepdims=True)
    vn = ((v - mean) * jax.lax.rsqrt(var + 1e-5)).reshape(N, H, W, Cout)
    y = vn * params["gamma"].reshape(1, 1, 1, Cout) + params["beta"].reshape(1, 1, 1, Cout)
    y = jnp.maximum(y, 0.0)
    return jnp.transpose(y, (0, 3, 1, 2))


if __name__ == "__main__":
    # Small shapes consistent with the module:
    #   prev_channel=8, input_channel=8, output_channel=16 (divisible by 8 groups)
    prev_channel, input_channel, output_channel = 8, 8, 16
    N, H0, W0 = 2, 16, 16   # x is half resolution; prev feature map is 2x spatial

    key = jax.random.PRNGKey(0)
    k_prev, k_x, k_par = jax.random.split(key, 3)
    prev_feature_map = jax.random.normal(
        k_prev, (N, prev_channel, 2 * H0, 2 * W0), jnp.float32)
    x = jax.random.normal(k_x, (N, input_channel, H0, W0), jnp.float32)

    params = init_params(prev_channel, input_channel, output_channel, k_par)

    out = unet_up_block(prev_feature_map, x, params, up_sample=True)
    jax.block_until_ready(out)

    assert out.shape == (N, output_channel, 2 * H0, 2 * W0)
    assert bool(jnp.all(out >= 0.0))          # ReLU output

    # Numerical self-check against the plain-JAX reference (loose tolerance:
    # bf16 conv operands, bf16 upsample intermediate, bf16 output; stats in f32).
    ref = _reference_forward(prev_feature_map, x, params, up_sample=True)
    err = jnp.abs(out - ref)
    tol = 0.08 + 0.05 * jnp.abs(ref)
    assert bool(jnp.all(err <= tol)), f"max abs err {float(jnp.max(err)):.4f}"

    print("KERNEL_OK")
</pallas_src>

<mosaic_0001>
module attributes {stable_mosaic.version = 11 : i64} {
  func.func @_conv_gn_relu_kernel(%arg0: i32, %arg1: memref<1x8x1024xbf16, #tpu.memory_space<vmem>>, %arg2: memref<1x8x1024xbf16, #tpu.memory_space<vmem>>, %arg3: memref<3x16x48xbf16, #tpu.memory_space<vmem>>, %arg4: memref<16x1xf32, #tpu.memory_space<vmem>>, %arg5: memref<16x1xf32, #tpu.memory_space<vmem>>, %arg6: memref<16x1xf32, #tpu.memory_space<vmem>>, %arg7: memref<16x8xf32, #tpu.memory_space<vmem>>, %arg8: memref<8x16xf32, #tpu.memory_space<vmem>>, %arg9: memref<1x16x1024xbf16, #tpu.memory_space<vmem>>, %arg10: memref<48x1088xbf16, #tpu.memory_space<vmem>>) attributes {dimension_semantics = [#tpu.dimension_semantics<parallel>], iteration_bounds = array<i64: 2>, scalar_prefetch = 0 : i64, scratch_operands = 1 : i64, tpu.core_type = #tpu.core_type<tc>, window_params = [{transform_indices = @transform_0, window_bounds = array<i64: 1, 8, 1024>}, {transform_indices = @transform_1, window_bounds = array<i64: 1, 8, 1024>}, {pipeline_mode = #tpu.pipeline_mode<synchronous>, transform_indices = @transform_2, window_bounds = array<i64: 3, 16, 48>}, {pipeline_mode = #tpu.pipeline_mode<synchronous>, transform_indices = @transform_3, window_bounds = array<i64: 16, 1>}, {pipeline_mode = #tpu.pipeline_mode<synchronous>, transform_indices = @transform_4, window_bounds = array<i64: 16, 1>}, {pipeline_mode = #tpu.pipeline_mode<synchronous>, transform_indices = @transform_5, window_bounds = array<i64: 16, 1>}, {pipeline_mode = #tpu.pipeline_mode<synchronous>, transform_indices = @transform_6, window_bounds = array<i64: 16, 8>}, {pipeline_mode = #tpu.pipeline_mode<synchronous>, transform_indices = @transform_7, window_bounds = array<i64: 8, 16>}, {transform_indices = @transform_8, window_bounds = array<i64: 1, 16, 1024>}]} {
    %c0 = arith.constant 0 : index
    %c0_0 = arith.constant 0 : index
    %c0_1 = arith.constant 0 : index
    %0 = vector.load %arg1[%c0, %c0_0, %c0_1] : memref<1x8x1024xbf16, #tpu.memory_space<vmem>>, vector<1x8x1024xbf16>
    %1 = vector.shape_cast %0 : vector<1x8x1024xbf16> to vector<8x1024xbf16>
    %2 = arith.extf %1 : vector<8x1024xbf16> to vector<8x1024xf32>
    %c0_2 = arith.constant 0 : index
    %c0_3 = arith.constant 0 : index
    %c0_4 = arith.constant 0 : index
    %3 = vector.load %arg2[%c0_2, %c0_3, %c0_4] : memref<1x8x1024xbf16, #tpu.memory_space<vmem>>, vector<1x8x1024xbf16>
    %4 = vector.shape_cast %3 : vector<1x8x1024xbf16> to vector<8x1024xbf16>
    %5 = arith.extf %4 : vector<8x1024xbf16> to vector<8x1024xf32>
    %6 = tpu.concatenate %2, %5 in 0 : vector<8x1024xf32>, vector<8x1024xf32> -> vector<16x1024xf32>
    %7 = arith.truncf %6 : vector<16x1024xf32> to vector<16x1024xbf16>
    %8 = tpu.iota {dimensions = array<i32: 1>} : vector<1x1024xi32>
    %c32_i32 = arith.constant 32 : i32
    %c0_i32 = arith.constant 0 : i32
    %9 = arith.cmpi eq, %c32_i32, %c0_i32 : i32
    %c1_i32 = arith.constant 1 : i32
    %10 = arith.select %9, %c1_i32, %c32_i32 : i32
    %11 = vector.broadcast %10 : i32 to vector<1x1024xi32>
    %12 = arith.remsi %8, %11 : vector<1x1024xi32>
    %c0_i32_5 = arith.constant 0 : i32
    %13 = vector.broadcast %c0_i32_5 : i32 to vector<1x1024xi32>
    %14 = arith.cmpi ne, %12, %13 : vector<1x1024xi32>
    %c0_i32_6 = arith.constant 0 : i32
    %15 = vector.broadcast %c0_i32_6 : i32 to vector<1x1024xi32>
    %16 = arith.cmpi slt, %12, %15 : vector<1x1024xi32>
    %c0_i32_7 = arith.constant 0 : i32
    %17 = arith.cmpi slt, %10, %c0_i32_7 : i32
    %18 = vector.broadcast %17 : i1 to vector<1x1024xi1>
    %19 = vector.broadcast %18 : vector<1x1024xi1> to vector<1x1024xi1>
    %20 = arith.xori %16, %19 : vector<1x1024xi1>
    %21 = arith.andi %20, %14 : vector<1x1024xi1>
    %22 = vector.broadcast %10 : i32 to vector<1x1024xi32>
    %23 = arith.addi %12, %22 : vector<1x1024xi32>
    %24 = arith.select %21, %23, %12 : vector<1x1024xi1>, vector<1x1024xi32>
    %c0_i32_8 = arith.constant 0 : i32
    %25 = vector.broadcast %c0_i32_8 : i32 to vector<1x1024xi32>
    %26 = arith.cmpi ne, %24, %25 : vector<1x1024xi32>
    %c31_i32 = arith.constant 31 : i32
    %27 = vector.broadcast %c31_i32 : i32 to vector<1x1024xi32>
    %28 = arith.cmpi ne, %24, %27 : vector<1x1024xi32>
    %cst = arith.constant 0.000000e+00 : bf16
    %29 = vector.broadcast %cst : bf16 to vector<48x33xbf16>
    %c0_9 = arith.constant 0 : index
    %c0_10 = arith.constant 0 : index
    %30 = vector.load %arg10[%c0_9, %c0_10] : memref<48x1088xbf16, #tpu.memory_space<vmem>>, vector<48x33xbf16>
    tpu.vector_store %arg10[%c0_9, %c0_10], %29 {strides = array<i32>} : memref<48x1088xbf16, #tpu.memory_space<vmem>>, vector<48x33xbf16>,
    %c0_11 = arith.constant 0 : index
    %c1055 = arith.constant 1055 : index
    %31 = vector.load %arg10[%c0_11, %c1055] : memref<48x1088xbf16, #tpu.memory_space<vmem>>, vector<48x33xbf16>
    tpu.vector_store %arg10[%c0_11, %c1055], %29 {strides = array<i32>} : memref<48x1088xbf16, #tpu.memory_space<vmem>>, vector<48x33xbf16>,
    %c0_i32_12 = arith.constant 0 : i32
    %32 = arith.sitofp %c0_i32_12 : i32 to bf16
    %33 = vector.shape_cast %28 : vector<1x1024xi1> to vector<1x1024xi1>
    %34 = vector.broadcast %33 : vector<1x1024xi1> to vector<16x1024xi1>
    %35 = vector.broadcast %32 : bf16 to vector<16x1024xbf16>
    %36 = arith.select %34, %7, %35 : vector<16x1024xi1>, vector<16x1024xbf16>
    %c0_13 = arith.constant 0 : index
    %c33 = arith.constant 33 : index
    %37 = vector.load %arg10[%c0_13, %c33] : memref<48x1088xbf16, #tpu.memory_space<vmem>>, vector<16x1024xbf16>
    tpu.vector_store %arg10[%c0_13, %c33], %36 {strides = array<i32>} : memref<48x1088xbf16, #tpu.memory_space<vmem>>, vector<16x1024xbf16>,
    %c16 = arith.constant 16 : index
    %c32 = arith.constant 32 : index
    %38 = vector.load %arg10[%c16, %c32] : memref<48x1088xbf16, #tpu.memory_space<vmem>>, vector<16x1024xbf16>
    tpu.vector_store %arg10[%c16, %c32], %7 {strides = array<i32>} : memref<48x1088xbf16, #tpu.memory_space<vmem>>, vector<16x1024xbf16>,
    %c0_i32_14 = arith.constant 0 : i32
    %39 = arith.sitofp %c0_i32_14 : i32 to bf16
    %40 = vector.shape_cast %26 : vector<1x1024xi1> to vector<1x1024xi1>
    %41 = vector.broadcast %40 : vector<1x1024xi1> to vector<16x1024xi1>
    %42 = vector.broadcast %39 : bf16 to vector<16x1024xbf16>
    %43 = arith.select %41, %7, %42 : vector<16x1024xi1>, vector<16x1024xbf16>
    %c32_15 = arith.constant 32 : index
    %c31 = arith.constant 31 : index
    %44 = vector.load %arg10[%c32_15, %c31] : memref<48x1088xbf16, #tpu.memory_space<vmem>>, vector<16x1024xbf16>
    tpu.vector_store %arg10[%c32_15, %c31], %43 {strides = array<i32>} : memref<48x1088xbf16, #tpu.memory_space<vmem>>, vector<16x1024xbf16>,
    %cst_16 = arith.constant 0.000000e+00 : f32
    %45 = vector.broadcast %cst_16 : f32 to vector<16x1024xf32>
    %c0_17 = arith.constant 0 : index
    %c0_18 = arith.constant 0 : index
    %46 = vector.load %arg10[%c0_17, %c0_18] : memref<48x1088xbf16, #tpu.memory_space<vmem>>, vector<48x1024xbf16>
    %c0_19 = arith.constant 0 : index
    %c0_20 = arith.constant 0 : index
    %c0_21 = arith.constant 0 : index
    %47 = vector.load %arg3[%c0_19, %c0_20, %c0_21] : memref<3x16x48xbf16, #tpu.memory_space<vmem>>, vector<1x16x48xbf16>
    %48 = vector.shape_cast %47 : vector<1x16x48xbf16> to vector<16x48xbf16>
    %cst_22 = arith.constant dense<0.000000e+00> : vector<16x1024xf32>
    %49 = tpu.matmul %48, %46, %cst_22 {dimension_numbers = #tpu.dot_dimension_numbers<[1], [0], [0], [1], [0, 0, 1, 1], [], []>} : vector<16x48xbf16>, vector<48x1024xbf16>, vector<16x1024xf32> -> vector<16x1024xf32>
    %50 = arith.addf %45, %49 : vector<16x1024xf32>
    %c0_23 = arith.constant 0 : index
    %c32_24 = arith.constant 32 : index
    %51 = vector.load %arg10[%c0_23, %c32_24] : memref<48x1088xbf16, #tpu.memory_space<vmem>>, vector<48x1024xbf16>
    %c1 = arith.constant 1 : index
    %c0_25 = arith.constant 0 : index
    %c0_26 = arith.constant 0 : index
    %52 = vector.load %arg3[%c1, %c0_25, %c0_26] : memref<3x16x48xbf16, #tpu.memory_space<vmem>>, vector<1x16x48xbf16>
    %53 = vector.shape_cast %52 : vector<1x16x48xbf16> to vector<16x48xbf16>
    %cst_27 = arith.constant dense<0.000000e+00> : vector<16x1024xf32>
    %54 = tpu.matmul %53, %51, %cst_27 {dimension_numbers = #tpu.dot_dimension_numbers<[1], [0], [0], [1], [0, 0, 1, 1], [], []>} : vector<16x48xbf16>, vector<48x1024xbf16>, vector<16x1024xf32> -> vector<16x1024xf32>
    %55 = arith.addf %50, %54 : vector<16x1024xf32>
    %c0_28 = arith.constant 0 : index
    %c64 = arith.constant 64 : index
    %56 = vector.load %arg10[%c0_28, %c64] : memref<48x1088xbf16, #tpu.memory_space<vmem>>, vector<48x1024xbf16>
    %c2 = arith.constant 2 : index
    %c0_29 = arith.constant 0 : index
    %c0_30 = arith.constant 0 : index
    %57 = vector.load %arg3[%c2, %c0_29, %c0_30] : memref<3x16x48xbf16, #tpu.memory_space<vmem>>, vector<1x16x48xbf16>
    %58 = vector.shape_cast %57 : vector<1x16x48xbf16> to vector<16x48xbf16>
    %cst_31 = arith.constant dense<0.000000e+00> : vector<16x1024xf32>
    %59 = tpu.matmul %58, %56, %cst_31 {dimension_numbers = #tpu.dot_dimension_numbers<[1], [0], [0], [1], [0, 0, 1, 1], [], []>} : vector<16x48xbf16>, vector<48x1024xbf16>, vector<16x1024xf32> -> vector<16x1024xf32>
    %60 = arith.addf %55, %59 : vector<16x1024xf32>
    %c0_32 = arith.constant 0 : index
    %c0_33 = arith.constant 0 : index
    %61 = vector.load %arg4[%c0_32, %c0_33] : memref<16x1xf32, #tpu.memory_space<vmem>>, vector<16x1xf32>
    %cst_34 = arith.constant dense<0.000000e+00> : vector<16xf32>
    %62 = vector.multi_reduction <add>, %60, %cst_34 [1] : vector<16x1024xf32> to vector<16xf32>
    %63 = vector.shape_cast %62 : vector<16xf32> to vector<16x1xf32>
    %64 = arith.mulf %60, %60 : vector<16x1024xf32>
    %cst_35 = arith.constant dense<0.000000e+00> : vector<16xf32>
    %65 = vector.multi_reduction <add>, %64, %cst_35 [1] : vector<16x1024xf32> to vector<16xf32>
    %66 = vector.shape_cast %65 : vector<16xf32> to vector<16x1xf32>
    %cst_36 = arith.constant 1.024000e+03 : f32
    %67 = vector.broadcast %cst_36 : f32 to vector<16x1xf32>
    %68 = arith.mulf %67, %61 : vector<16x1xf32>
    %69 = arith.addf %63, %68 : vector<16x1xf32>
    %cst_37 = arith.constant 2.000000e+00 : f32
    %70 = vector.broadcast %cst_37 : f32 to vector<16x1xf32>
    %71 = arith.mulf %70, %61 : vector<16x1xf32>
    %72 = arith.mulf %71, %63 : vector<16x1xf32>
    %73 = arith.addf %66, %72 : vector<16x1xf32>
    %74 = arith.mulf %61, %61 : vector<16x1xf32>
    %cst_38 = arith.constant 1.024000e+03 : f32
    %75 = vector.broadcast %cst_38 : f32 to vector<16x1xf32>
    %76 = arith.mulf %75, %74 : vector<16x1xf32>
    %77 = arith.addf %73, %76 : vector<16x1xf32>
    %c0_39 = arith.constant 0 : index
    %c0_40 = arith.constant 0 : index
    %78 = vector.load %arg8[%c0_39, %c0_40] : memref<8x16xf32, #tpu.memory_space<vmem>>, vector<8x16xf32>
    %79 = tpu.concatenate %69, %77 in 1 : vector<16x1xf32>, vector<16x1xf32> -> vector<16x2xf32>
    %cst_41 = arith.constant dense<0.000000e+00> : vector<8x2xf32>
    %80 = tpu.matmul %78, %79, %cst_41 {dimension_numbers = #tpu.dot_dimension_numbers<[1], [0], [0], [1], [0, 0, 1, 1], [], []>} : vector<8x16xf32>, vector<16x2xf32>, vector<8x2xf32> -> vector<8x2xf32>
    %81 = vector.extract_strided_slice %80 {offsets = [0, 0], sizes = [8, 1], strides = [1, 1]} : vector<8x2xf32> to vector<8x1xf32>
    %cst_42 = arith.constant 2.048000e+03 : f32
    %82 = vector.broadcast %cst_42 : f32 to vector<8x1xf32>
    %83 = arith.divf %81, %82 : vector<8x1xf32>
    %84 = vector.extract_strided_slice %80 {offsets = [0, 1], sizes = [8, 1], strides = [1, 1]} : vector<8x2xf32> to vector<8x1xf32>
    %cst_43 = arith.constant 2.048000e+03 : f32
    %85 = vector.broadcast %cst_43 : f32 to vector<8x1xf32>
    %86 = arith.divf %84, %85 : vector<8x1xf32>
    %87 = arith.mulf %83, %83 : vector<8x1xf32>
    %88 = arith.subf %86, %87 : vector<8x1xf32>
    %cst_44 = arith.constant 0.000000e+00 : f32
    %89 = vector.broadcast %cst_44 : f32 to vector<8x1xf32>
    %90 = arith.maximumf %88, %89 : vector<8x1xf32>
    %cst_45 = arith.constant 9.99999974E-6 : f32
    %91 = vector.broadcast %cst_45 : f32 to vector<8x1xf32>
    %92 = arith.addf %90, %91 : vector<8x1xf32>
    %93 = math.rsqrt %92 : vector<8x1xf32>
    %c0_46 = arith.constant 0 : index
    %c0_47 = arith.constant 0 : index
    %94 = vector.load %arg7[%c0_46, %c0_47] : memref<16x8xf32, #tpu.memory_space<vmem>>, vector<16x8xf32>
    %95 = tpu.concatenate %83, %93 in 1 : vector<8x1xf32>, vector<8x1xf32> -> vector<8x2xf32>
    %cst_48 = arith.constant dense<0.000000e+00> : vector<16x2xf32>
    %96 = tpu.matmul %94, %95, %cst_48 {dimension_numbers = #tpu.dot_dimension_numbers<[1], [0], [0], [1], [0, 0, 1, 1], [], []>} : vector<16x8xf32>, vector<8x2xf32>, vector<16x2xf32> -> vector<16x2xf32>
    %97 = vector.extract_strided_slice %96 {offsets = [0, 0], sizes = [16, 1], strides = [1, 1]} : vector<16x2xf32> to vector<16x1xf32>
    %98 = vector.extract_strided_slice %96 {offsets = [0, 1], sizes = [16, 1], strides = [1, 1]} : vector<16x2xf32> to vector<16x1xf32>
    %c0_49 = arith.constant 0 : index
    %c0_50 = arith.constant 0 : index
    %99 = vector.load %arg5[%c0_49, %c0_50] : memref<16x1xf32, #tpu.memory_space<vmem>>, vector<16x1xf32>
    %100 = arith.mulf %98, %99 : vector<16x1xf32>
    %101 = arith.subf %61, %97 : vector<16x1xf32>
    %102 = arith.mulf %101, %100 : vector<16x1xf32>
    %c0_51 = arith.constant 0 : index
    %c0_52 = arith.constant 0 : index
    %103 = vector.load %arg6[%c0_51, %c0_52] : memref<16x1xf32, #tpu.memory_space<vmem>>, vector<16x1xf32>
    %104 = arith.addf %102, %103 : vector<16x1xf32>
    %105 = vector.broadcast %100 : vector<16x1xf32> to vector<16x1024xf32>
    %106 = arith.mulf %60, %105 : vector<16x1024xf32>
    %107 = vector.broadcast %104 : vector<16x1xf32> to vector<16x1024xf32>
    %108 = arith.addf %106, %107 : vector<16x1024xf32>
    %cst_53 = arith.constant 0.000000e+00 : f32
    %109 = vector.broadcast %cst_53 : f32 to vector<16x1024xf32>
    %110 = arith.maximumf %108, %109 : vector<16x1024xf32>
    %111 = arith.truncf %110 : vector<16x1024xf32> to vector<16x1024xbf16>
    %c0_54 = arith.constant 0 : index
    %c0_55 = arith.constant 0 : index
    %c0_56 = arith.constant 0 : index
    %112 = vector.load %arg9[%c0_54, %c0_55, %c0_56] : memref<1x16x1024xbf16, #tpu.memory_space<vmem>>, vector<1x16x1024xbf16>
    %113 = vector.shape_cast %112 : vector<1x16x1024xbf16> to vector<16x1024xbf16>
    %114 = vector.shape_cast %111 : vector<16x1024xbf16> to vector<1x16x1024xbf16>
    tpu.vector_store %arg9[%c0_54, %c0_55, %c0_56], %114 {strides = array<i32>} : memref<1x16x1024xbf16, #tpu.memory_space<vmem>>, vector<1x16x1024xbf16>,
    return
  }
  func.func @transform_0(%arg0: i32) -> (i32, i32, i32) {
    %c0_i32 = arith.constant 0 : i32
    %c0_i32_0 = arith.constant 0 : i32
    %c0_i32_1 = arith.constant 0 : i32
    return %arg0, %c0_i32, %c0_i32_0 : i32, i32, i32
  }
  func.func @transform_1(%arg0: i32) -> (i32, i32, i32) {
    %c0_i32 = arith.constant 0 : i32
    %c0_i32_0 = arith.constant 0 : i32
    %c0_i32_1 = arith.constant 0 : i32
    return %arg0, %c0_i32, %c0_i32_0 : i32, i32, i32
  }
  func.func @transform_2(%arg0: i32) -> (i32, i32, i32) {
    %c0_i32 = arith.constant 0 : i32
    %c0_i32_0 = arith.constant 0 : i32
    %c0_i32_1 = arith.constant 0 : i32
    %c0_i32_2 = arith.constant 0 : i32
    return %c0_i32, %c0_i32_0, %c0_i32_1 : i32, i32, i32
  }
  func.func @transform_3(%arg0: i32) -> (i32, i32) {
    %c0_i32 = arith.constant 0 : i32
    %c0_i32_0 = arith.constant 0 : i32
    %c0_i32_1 = arith.constant 0 : i32
    return %c0_i32, %c0_i32_0 : i32, i32
  }
  func.func @transform_4(%arg0: i32) -> (i32, i32) {
    %c0_i32 = arith.constant 0 : i32
    %c0_i32_0 = arith.constant 0 : i32
    %c0_i32_1 = arith.constant 0 : i32
    return %c0_i32, %c0_i32_0 : i32, i32
  }
  func.func @transform_5(%arg0: i32) -> (i32, i32) {
    %c0_i32 = arith.constant 0 : i32
    %c0_i32_0 = arith.constant 0 : i32
    %c0_i32_1 = arith.constant 0 : i32
    return %c0_i32, %c0_i32_0 : i32, i32
  }
  func.func @transform_6(%arg0: i32) -> (i32, i32) {
    %c0_i32 = arith.constant 0 : i32
    %c0_i32_0 = arith.constant 0 : i32
    %c0_i32_1 = arith.constant 0 : i32
    return %c0_i32, %c0_i32_0 : i32, i32
  }
  func.func @transform_7(%arg0: i32) -> (i32, i32) {
    %c0_i32 = arith.constant 0 : i32
    %c0_i32_0 = arith.constant 0 : i32
    %c0_i32_1 = arith.constant 0 : i32
    return %c0_i32, %c0_i32_0 : i32, i32
  }
  func.func @transform_8(%arg0: i32) -> (i32, i32, i32) {
    %c0_i32 = arith.constant 0 : i32
    %c0_i32_0 = arith.constant 0 : i32
    %c0_i32_1 = arith.constant 0 : i32
    return %arg0, %c0_i32, %c0_i32_0 : i32, i32, i32
  }
}

</mosaic_0001>

<llo_original>
// kernel: tpu_custom_call.1
$region0: #{tpu_custom_call.1}
  #allocation0 [shape = 'u32[]', space=smem, size = 0x4, offset = 0x4, fixed_abs, tag = 'smem constant byte address 0x4 - core index']
  #allocation1 [shape = 'u32[72,128]{1,0:T(1,128)}', space=vmem, size = 0x9000, scoped, tag = 'internal scratch']
  #allocation2 [shape = 'bf16[48,1088]{1,0:T(8,128)(2,1)}', space=vmem, size = 0x1b000, scoped, tag = 'scratch operand']
  %s0 = inlined_call_operand.hbm [shape: bf16[2,8,1024], index: 0, kind: input, shape index: {}]
  %s1 = inlined_call_operand.hbm [shape: bf16[2,8,1024], index: 1, kind: input, shape index: {}]
  %s2 = inlined_call_operand.vmem [shape: bf16[3,16,48], index: 2, kind: input, shape index: {}]
  %s3 = inlined_call_operand.vmem [shape: f32[16,1], index: 3, kind: input, shape index: {}]
  %s4 = inlined_call_operand.vmem [shape: f32[16,1], index: 4, kind: input, shape index: {}]
  %s5 = inlined_call_operand.vmem [shape: f32[16,1], index: 5, kind: input, shape index: {}]
  %s6 = inlined_call_operand.vmem [shape: f32[16,8], index: 6, kind: input, shape index: {}]
  %s7 = inlined_call_operand.vmem [shape: f32[8,16], index: 7, kind: input, shape index: {}]
  %s8 = inlined_call_operand.hbm [shape: bf16[2,16,1024], index: 8, kind: output, shape index: {}]
  %s9 = sld [smem:[#allocation0]]
  $region73: #{tpu_custom_call.1} parent=0
    _
  %s11 = ssub.s32 1, %s9
  %s12 = scalar_select 0, %s11, %s9
  $region1: #{tpu_custom_call.1} parent=0
    #allocation3 [shape = 'u8[32768]{0}', space=vmem, size = 0x8000, scoped, tag = 'input window, operand 0']
    #allocation4 [shape = 's32[2]{0}', space=sflag, size = 0x8, scoped, tag = 'scoped memory for tpu_custom_call.1']
    #allocation5 [shape = 's32[2]{0}', space=sflag, size = 0x8, scoped, tag = 'scoped memory for tpu_custom_call.1']
    #allocation6 [shape = 'u8[32768]{0}', space=vmem, size = 0x8000, scoped, tag = 'input window, operand 1']
    #allocation7 [shape = 's32[2]{0}', space=sflag, size = 0x8, scoped, tag = 'scoped memory for tpu_custom_call.1']
    #allocation8 [shape = 'u8[65536]{0}', space=vmem, size = 0x10000, scoped, tag = 'output window, operand 0']
    %13 = vsyncpa [#allocation4], 0
    %s14 = scalar_lea.sflag [#allocation4], 1
    %15 = vsyncpa %s14, 0
    %16 = vsyncpa [#allocation7], 0
    %s17 = scalar_lea.sflag [#allocation7], 1
    %18 = vsyncpa %s17, 0
    %19 = vsyncpa [#allocation5], 0
    %s20 = scalar_lea.sflag [#allocation5], 1
    %21 = vsyncpa %s20, 0
    loop: start=0, step=1, limit=4
    $region2: #{tpu_custom_call.1} parent=1 // loop_pre_header
      _
    $region3: #{tpu_custom_call.1} parent=1 // loop_header
      %s23 = sphi 0, %s27
      %p24 = scmp.ge.s32.totalorder %s23, 4
      %s33 = sphi 0, %s35
      %s36 = sphi 0, %s33
      %s37 = sphi 0, %s36
      %s53 = sphi 0, %s37
      %s59 = sphi 0, %s61
      %s62 = sphi 0, %s59
      %s63 = sphi 0, %s62
      %s79 = sphi 0, %s63
      %s83 = sphi 0, %s83
      %s85 = sphi 0, %s83
      %s86 = sphi 0, %s85
      %s100 = sphi 0, %s86
      %s104 = sphi 0, %s104
      %s106 = sphi 0, %s104
      %s107 = sphi 0, %s106
      %s121 = sphi 0, %s107
      %s125 = sphi 0, %s125
      %s127 = sphi 0, %s125
      %s128 = sphi 0, %s127
      %s142 = sphi 0, %s128
      %s146 = sphi 0, %s146
      %s148 = sphi 0, %s146
      %s149 = sphi 0, %s148
      %s163 = sphi 0, %s149
      %s167 = sphi 0, %s167
      %s169 = sphi 0, %s167
      %s170 = sphi 0, %s169
      %s184 = sphi 0, %s170
      %s188 = sphi 0, %s188
      %s190 = sphi 0, %s188
      %s191 = sphi 0, %s190
      %s205 = sphi 0, %s191
      %s211 = sphi 0, %s213
      %s214 = sphi 0, %s211
      %s215 = sphi 0, %s214
      %s231 = sphi 0, %s215
    $region4: #{tpu_custom_call.1} parent=1 // loop_header_branch
      %26 = sbr.rel (%p24) target = $region8
    $region5: #{tpu_custom_call.1} parent=1 // loop_body
      %s28 = ssub.s32 %s23, 1
      %s29 = ssub.s32 %s23, 2
      %s30 = sadd.s32 %s23, 1
      %s31 = ssub.s32 %s23, %s30
      %p32 = scmp.eq.s32.totalorder %s31, 0
      %s34 = sadd.s32 %s33, 1
      %s35 = scalar_select %p32, %s33, %s34
      %p38 = pneg %p32
      %p39 = scmp.eq.s32.totalorder %s23, 1
      %p40 = por %p38, %p39
      %p41 = scmp.ne.s32.totalorder %s33, %s36
      %p42 = scmp.eq.s32.totalorder %s23, 0
      %p43 = por %p41, %p42
      %p44 = scmp.ne.s32.totalorder %s33, %s36
      %p45 = scmp.eq.s32.totalorder %s28, 1
      %p46 = por %p44, %p45
      %p47 = scmp.ne.s32.totalorder %s36, %s37
      %p48 = scmp.eq.s32.totalorder %s28, 0
      %p49 = por %p47, %p48
      %p50 = scmp.ne.s32.totalorder %s36, %s37
      %p51 = scmp.eq.s32.totalorder %s29, 1
      %p52 = por %p50, %p51
      %p54 = scmp.ne.s32.totalorder %s37, %s53
      %p55 = scmp.eq.s32.totalorder %s29, 0
      %p56 = por %p54, %p55
      %s57 = ssub.s32 %s23, %s30
      %p58 = scmp.eq.s32.totalorder %s57, 0
      %s60 = sadd.s32 %s59, 1
      %s61 = scalar_select %p58, %s59, %s60
      %p64 = pneg %p58
      %p65 = scmp.eq.s32.totalorder %s23, 1
      %p66 = por %p64, %p65
      %p67 = scmp.ne.s32.totalorder %s59, %s62
      %p68 = scmp.eq.s32.totalorder %s23, 0
      %p69 = por %p67, %p68
      %p70 = scmp.ne.s32.totalorder %s59, %s62
      %p71 = scmp.eq.s32.totalorder %s28, 1
      %p72 = por %p70, %p71
      %p73 = scmp.ne.s32.totalorder %s62, %s63
      %p74 = scmp.eq.s32.totalorder %s28, 0
      %p75 = por %p73, %p74
      %p76 = scmp.ne.s32.totalorder %s62, %s63
      %p77 = scmp.eq.s32.totalorder %s29, 1
      %p78 = por %p76, %p77
      %p80 = scmp.ne.s32.totalorder %s63, %s79
      %p81 = scmp.eq.s32.totalorder %s29, 0
      %p82 = por %p80, %p81
      %s84 = sadd.s32 %s83, 1
      %p87 = scmp.eq.s32.totalorder %s23, 1
      %p88 = scmp.ne.s32.totalorder %s83, %s85
      %p89 = scmp.eq.s32.totalorder %s23, 0
      %p90 = por %p88, %p89
      %p91 = scmp.ne.s32.totalorder %s83, %s85
      %p92 = scmp.eq.s32.totalorder %s28, 1
      %p93 = por %p91, %p92
      %p94 = scmp.ne.s32.totalorder %s85, %s86
      %p95 = scmp.eq.s32.totalorder %s28, 0
      %p96 = por %p94, %p95
      %p97 = scmp.ne.s32.totalorder %s85, %s86
      %p98 = scmp.eq.s32.totalorder %s29, 1
      %p99 = por %p97, %p98
      %p101 = scmp.ne.s32.totalorder %s86, %s100
      %p102 = scmp.eq.s32.totalorder %s29, 0
      %p103 = por %p101, %p102
      %s105 = sadd.s32 %s104, 1
      %p108 = scmp.eq.s32.totalorder %s23, 1
      %p109 = scmp.ne.s32.totalorder %s104, %s106
      %p110 = scmp.eq.s32.totalorder %s23, 0
      %p111 = por %p109, %p110
      %p112 = scmp.ne.s32.totalorder %s104, %s106
      %p113 = scmp.eq.s32.totalorder %s28, 1
      %p114 = por %p112, %p113
      %p115 = scmp.ne.s32.totalorder %s106, %s107
      %p116 = scmp.eq.s32.totalorder %s28, 0
      %p117 = por %p115, %p116
      %p118 = scmp.ne.s32.totalorder %s106, %s107
      %p119 = scmp.eq.s32.totalorder %s29, 1
      %p120 = por %p118, %p119
      %p122 = scmp.ne.s32.totalorder %s107, %s121
      %p123 = scmp.eq.s32.totalorder %s29, 0
      %p124 = por %p122, %p123
      %s126 = sadd.s32 %s125, 1
      %p129 = scmp.eq.s32.totalorder %s23, 1
      %p130 = scmp.ne.s32.totalorder %s125, %s127
      %p131 = scmp.eq.s32.totalorder %s23, 0
      %p132 = por %p130, %p131
      %p133 = scmp.ne.s32.totalorder %s125, %s127
      %p134 = scmp.eq.s32.totalorder %s28, 1
      %p135 = por %p133, %p134
      %p136 = scmp.ne.s32.totalorder %s127, %s128
      %p137 = scmp.eq.s32.totalorder %s28, 0
      %p138 = por %p136, %p137
      %p139 = scmp.ne.s32.totalorder %s127, %s128
      %p140 = scmp.eq.s32.totalorder %s29, 1
      %p141 = por %p139, %p140
      %p143 = scmp.ne.s32.totalorder %s128, %s142
      %p144 = scmp.eq.s32.totalorder %s29, 0
      %p145 = por %p143, %p144
      %s147 = sadd.s32 %s146, 1
      %p150 = scmp.eq.s32.totalorder %s23, 1
      %p151 = scmp.ne.s32.totalorder %s146, %s148
      %p152 = scmp.eq.s32.totalorder %s23, 0
      %p153 = por %p151, %p152
      %p154 = scmp.ne.s32.totalorder %s146, %s148
      %p155 = scmp.eq.s32.totalorder %s28, 1
      %p156 = por %p154, %p155
      %p157 = scmp.ne.s32.totalorder %s148, %s149
      %p158 = scmp.eq.s32.totalorder %s28, 0
      %p159 = por %p157, %p158
      %p160 = scmp.ne.s32.totalorder %s148, %s149
      %p161 = scmp.eq.s32.totalorder %s29, 1
      %p162 = por %p160, %p161
      %p164 = scmp.ne.s32.totalorder %s149, %s163
      %p165 = scmp.eq.s32.totalorder %s29, 0
      %p166 = por %p164, %p165
      %s168 = sadd.s32 %s167, 1
      %p171 = scmp.eq.s32.totalorder %s23, 1
      %p172 = scmp.ne.s32.totalorder %s167, %s169
      %p173 = scmp.eq.s32.totalorder %s23, 0
      %p174 = por %p172, %p173
      %p175 = scmp.ne.s32.totalorder %s167, %s169
      %p176 = scmp.eq.s32.totalorder %s28, 1
      %p177 = por %p175, %p176
      %p178 = scmp.ne.s32.totalorder %s169, %s170
      %p179 = scmp.eq.s32.totalorder %s28, 0
      %p180 = por %p178, %p179
      %p181 = scmp.ne.s32.totalorder %s169, %s170
      %p182 = scmp.eq.s32.totalorder %s29, 1
      %p183 = por %p181, %p182
      %p185 = scmp.ne.s32.totalorder %s170, %s184
      %p186 = scmp.eq.s32.totalorder %s29, 0
      %p187 = por %p185, %p186
      %s189 = sadd.s32 %s188, 1
      %p192 = scmp.eq.s32.totalorder %s23, 1
      %p193 = scmp.ne.s32.totalorder %s188, %s190
      %p194 = scmp.eq.s32.totalorder %s23, 0
      %p195 = por %p193, %p194
      %p196 = scmp.ne.s32.totalorder %s188, %s190
      %p197 = scmp.eq.s32.totalorder %s28, 1
      %p198 = por %p196, %p197
      %p199 = scmp.ne.s32.totalorder %s190, %s191
      %p200 = scmp.eq.s32.totalorder %s28, 0
      %p201 = por %p199, %p200
      %p202 = scmp.ne.s32.totalorder %s190, %s191
      %p203 = scmp.eq.s32.totalorder %s29, 1
      %p204 = por %p202, %p203
      %p206 = scmp.ne.s32.totalorder %s191, %s205
      %p207 = scmp.eq.s32.totalorder %s29, 0
      %p208 = por %p206, %p207
      %s209 = ssub.s32 %s23, %s30
      %p210 = scmp.eq.s32.totalorder %s209, 0
      %s212 = sadd.s32 %s211, 1
      %s213 = scalar_select %p210, %s211, %s212
      %p216 = pneg %p210
      %p217 = scmp.eq.s32.totalorder %s23, 1
      %p218 = por %p216, %p217
      %p219 = scmp.ne.s32.totalorder %s211, %s214
      %p220 = scmp.eq.s32.totalorder %s23, 0
      %p221 = por %p219, %p220
      %p222 = scmp.ne.s32.totalorder %s211, %s214
      %p223 = scmp.eq.s32.totalorder %s28, 1
      %p224 = por %p222, %p223
      %p225 = scmp.ne.s32.totalorder %s214, %s215
      %p226 = scmp.eq.s32.totalorder %s28, 0
      %p227 = por %p225, %p226
      %p228 = scmp.ne.s32.totalorder %s214, %s215
      %p229 = scmp.eq.s32.totalorder %s29, 1
      %p230 = por %p228, %p229
      %p232 = scmp.ne.s32.totalorder %s215, %s231
      %p233 = scmp.eq.s32.totalorder %s29, 0
      %p234 = por %p232, %p233
      %p235 = scmp.le.s32.totalorder 1, %s23
      %p236 = scmp.lt.s32.totalorder %s23, 3
      %p237 = pnand %p235, %p236
      %p238 = pneg %p237
      // Predicated region
      $region9: #{tpu_custom_call.1} parent=5 // pred_check
        _
      $region10: #{tpu_custom_call.1} parent=5 // pred_check_branch
        %240 = sbr.rel (%p237) target = $region12
      $region11: #{tpu_custom_call.1} parent=5 // pred_region
        %s241 = ssub.s32 %s23, 1
        // Predicated region
        $region13: #{tpu_custom_call.1} parent=11 // pred_check
          %p242 = pneg %p96
        $region14: #{tpu_custom_call.1} parent=11 // pred_check_branch
          %244 = sbr.rel (%p242) target = $region16
        $region15: #{tpu_custom_call.1} parent=11 // pred_region
          _
        $region16: #{tpu_custom_call.1} parent=11 // pred_fallthru
          _
        // Predicated region
        $region17: #{tpu_custom_call.1} parent=11 // pred_check
          %p245 = pneg %p117
        $region18: #{tpu_custom_call.1} parent=11 // pred_check_branch
          %247 = sbr.rel (%p245) target = $region20
        $region19: #{tpu_custom_call.1} parent=11 // pred_region
          _
        $region20: #{tpu_custom_call.1} parent=11 // pred_fallthru
          _
        // Predicated region
        $region21: #{tpu_custom_call.1} parent=11 // pred_check
          %p248 = pneg %p138
        $region22: #{tpu_custom_call.1} parent=11 // pred_check_branch
          %250 = sbr.rel (%p248) target = $region24
        $region23: #{tpu_custom_call.1} parent=11 // pred_region
          _
        $region24: #{tpu_custom_call.1} parent=11 // pred_fallthru
          _
        // Predicated region
        $region25: #{tpu_custom_call.1} parent=11 // pred_check
          %p251 = pneg %p159
        $region26: #{tpu_custom_call.1} parent=11 // pred_check_branch
          %253 = sbr.rel (%p251) target = $region28
        $region27: #{tpu_custom_call.1} parent=11 // pred_region
          _
        $region28: #{tpu_custom_call.1} parent=11 // pred_fallthru
          _
        // Predicated region
        $region29: #{tpu_custom_call.1} parent=11 // pred_check
          %p254 = pneg %p180
        $region30: #{tpu_custom_call.1} parent=11 // pred_check_branch
          %256 = sbr.rel (%p254) target = $region32
        $region31: #{tpu_custom_call.1} parent=11 // pred_region
          _
        $region32: #{tpu_custom_call.1} parent=11 // pred_fallthru
          _
        // Predicated region
        $region33: #{tpu_custom_call.1} parent=11 // pred_check
          %p257 = pneg %p201
        $region34: #{tpu_custom_call.1} parent=11 // pred_check_branch
          %259 = sbr.rel (%p257) target = $region36
        $region35: #{tpu_custom_call.1} parent=11 // pred_region
          _
        $region36: #{tpu_custom_call.1} parent=11 // pred_fallthru
          _
      $region12: #{tpu_custom_call.1} parent=5 // pred_fallthru
        _
      %p260 = scmp.lt.s32.totalorder %s23, 2
      // Predicated region
      $region37: #{tpu_custom_call.1} parent=5 // pred_check
        %p261 = pneg %p260
      $region38: #{tpu_custom_call.1} parent=5 // pred_check_branch
        %263 = sbr.rel (%p261) target = $region40
      $region39: #{tpu_custom_call.1} parent=5 // pred_region
        // Predicated region
        $region41: #{tpu_custom_call.1} parent=39 // pred_check
          %p264 = pneg %p43
        $region42: #{tpu_custom_call.1} parent=39 // pred_check_branch
          %266 = sbr.rel (%p264) target = $region44
        $region43: #{tpu_custom_call.1} parent=39 // pred_region
          %s267 = sand.u32 %s33, 1
          %s268 = scalar_lea.sflag [#allocation4], %s267
          %s269 = sand.u32 %s33, 1
          %s270 = smul.addr %s269, 32
          %s271 = scalar_lea.vmem [#allocation3], %s270
          %273 = vsyncadd %s268, 0
          %s274 = smul.addr %s23, 8
          %s275 = smul.addr %s274, 4
          %s276 = scalar_lea.hbm %s0, %s275
          %s278 = sshll.u32 %s276, 4
          %s279 = int_to_ptr.hbm [resolvable:$true] %s278
          %s280 = sshll.u32 %s271, 4
          %s281 = int_to_ptr.vmem [resolvable:$true] %s280
          %283 = dma.hbm_to_vmem [thread:$0]  %s279, 512, %s281, %s268
        $region44: #{tpu_custom_call.1} parent=39 // pred_fallthru
          _
        // Predicated region
        $region45: #{tpu_custom_call.1} parent=39 // pred_check
          %p284 = pneg %p69
        $region46: #{tpu_custom_call.1} parent=39 // pred_check_branch
          %286 = sbr.rel (%p284) target = $region48
        $region47: #{tpu_custom_call.1} parent=39 // pred_region
          %s287 = sand.u32 %s59, 1
          %s288 = scalar_lea.sflag [#allocation7], %s287
          %s289 = sand.u32 %s59, 1
          %s290 = smul.addr %s289, 32
          %s291 = scalar_lea.vmem [#allocation6], %s290
          %293 = vsyncadd %s288, 0
          %s294 = smul.addr %s23, 8
          %s295 = smul.addr %s294, 4
          %s296 = scalar_lea.hbm %s1, %s295
          %s298 = sshll.u32 %s296, 4
          %s299 = int_to_ptr.hbm [resolvable:$true] %s298
          %s300 = sshll.u32 %s291, 4
          %s301 = int_to_ptr.vmem [resolvable:$true] %s300
          %303 = dma.hbm_to_vmem [thread:$0]  %s299, 512, %s301, %s288
        $region48: #{tpu_custom_call.1} parent=39 // pred_fallthru
          _
      $region40: #{tpu_custom_call.1} parent=5 // pred_fallthru
        _
      %p304 = scmp.le.s32.totalorder 1, %s23
      %p305 = scmp.lt.s32.totalorder %s23, 3
      %p306 = pnand %p304, %p305
      %p307 = pneg %p306
      // Predicated region
      $region49: #{tpu_custom_call.1} parent=5 // pred_check
        _
      $region50: #{tpu_custom_call.1} parent=5 // pred_check_branch
        %309 = sbr.rel (%p306) target = $region52
      $region51: #{tpu_custom_call.1} parent=5 // pred_region
        %s310 = ssub.s32 %s23, 1
        %s311 = sand.u32 %s36, 1
        %s312 = scalar_lea.sflag [#allocation4], %s311
        %s313 = sand.u32 %s36, 1
        %s314 = smul.addr %s313, 32
        %s315 = scalar_lea.vmem [#allocation3], %s314
        // Predicated region
        $region53: #{tpu_custom_call.1} parent=51 // pred_check
          %p316 = pneg %p49
        $region54: #{tpu_custom_call.1} parent=51 // pred_check_branch
          %318 = sbr.rel (%p316) target = $region56
        $region55: #{tpu_custom_call.1} parent=51 // pred_region
          %320 = dma.done %s312, 512
        $region56: #{tpu_custom_call.1} parent=51 // pred_fallthru
          _
        %s321 = sand.u32 %s62, 1
        %s322 = scalar_lea.sflag [#allocation7], %s321
        %s323 = sand.u32 %s62, 1
        %s324 = smul.addr %s323, 32
        %s325 = scalar_lea.vmem [#allocation6], %s324
        // Predicated region
        $region57: #{tpu_custom_call.1} parent=51 // pred_check
          %p326 = pneg %p75
        $region58: #{tpu_custom_call.1} parent=51 // pred_check_branch
          %328 = sbr.rel (%p326) target = $region60
        $region59: #{tpu_custom_call.1} parent=51 // pred_region
          %330 = dma.done %s322, 512
        $region60: #{tpu_custom_call.1} parent=51 // pred_fallthru
          _
        %s331 = sand.u32 %s36, 1
        %s332 = scalar_lea.sflag [#allocation4], %s331
        %s333 = sand.u32 %s36, 1
        %s334 = smul.addr %s333, 32
        %s335 = scalar_lea.vmem [#allocation3], %s334
        %p336 = pneg %p49
        %p337 = pneg %p46
        %s338 = sand.u32 %s62, 1
        %s339 = scalar_lea.sflag [#allocation7], %s338
        %s340 = sand.u32 %s62, 1
        %s341 = smul.addr %s340, 32
        %s342 = scalar_lea.vmem [#allocation6], %s341
        %p343 = pneg %p75
        %p344 = pneg %p72
        %p345 = pneg %p96
        %p346 = pneg %p93
        %p347 = pneg %p117
        %p348 = pneg %p114
        %p349 = pneg %p138
        %p350 = pneg %p135
        %p351 = pneg %p159
        %p352 = pneg %p156
        %p353 = pneg %p180
        %p354 = pneg %p177
        %p355 = pneg %p201
        %p356 = pneg %p198
        %p357 = pneg %p227
        %p358 = pneg %p224
        %s359 = sand.u32 %s214, 1
        %s360 = scalar_lea.sflag [#allocation5], %s359
        %s361 = sand.u32 %s214, 1
        %s362 = smul.addr %s361, 64
        %s363 = scalar_lea.vmem [#allocation8], %s362
        %v365 = vld [vmem:[%s315] sm:$0xff]
        %v366 = vld [vmem:[%s315 + $0x8] sm:$0xff]
        %v367 = vld [vmem:[%s315 + $0x10] sm:$0xff]
        %v368 = vld [vmem:[%s315 + $0x18] sm:$0xff]
        %v369 = vunpack.c.l.bf16 %v365
        %v370 = vunpack.c.h.bf16 %v365
        %v371 = vunpack.c.l.bf16 %v366
        %v372 = vunpack.c.h.bf16 %v366
        %v373 = vunpack.c.l.bf16 %v367
        %v374 = vunpack.c.h.bf16 %v367
        %v375 = vunpack.c.l.bf16 %v368
        %v376 = vunpack.c.h.bf16 %v368
        %v377 = vld [vmem:[%s325] sm:$0xff]
        %v378 = vld [vmem:[%s325 + $0x8] sm:$0xff]
        %v379 = vld [vmem:[%s325 + $0x10] sm:$0xff]
        %v380 = vld [vmem:[%s325 + $0x18] sm:$0xff]
        %v381 = vunpack.c.l.bf16 %v377
        %v382 = vunpack.c.h.bf16 %v377
        %v383 = vunpack.c.l.bf16 %v378
        %v384 = vunpack.c.h.bf16 %v378
        %v385 = vunpack.c.l.bf16 %v379
        %v386 = vunpack.c.h.bf16 %v379
        %v387 = vunpack.c.l.bf16 %v380
        %v388 = vunpack.c.h.bf16 %v380
        %v389 = vpack.c.bf16 %v370, %v369
        %v390 = vpack.c.bf16 %v372, %v371
        %v391 = vpack.c.bf16 %v374, %v373
        %v392 = vpack.c.bf16 %v376, %v375
        %v393 = vpack.c.bf16 %v382, %v381
        %v394 = vpack.c.bf16 %v384, %v383
        %v395 = vpack.c.bf16 %v386, %v385
        %v396 = vpack.c.bf16 %v388, %v387
        %v397 = vlaneseq
        %v398 = vand.u32 %v397, 127
        %v399 = vadd.s32 %v398, 128
        %v400 = vadd.s32 %v398, 256
        %v401 = vadd.s32 %v398, 384
        %v402 = vadd.s32 %v398, 512
        %v403 = vadd.s32 %v398, 640
        %v404 = vadd.s32 %v398, 768
        %v405 = vadd.s32 %v398, 896
        %vm406 = vcmp.lt.s32.totalorder %v398, 0
        %v407 = vsub.s32 0, %v398
        %v408 = vsel %vm406, %v407, %v398
        %v409 = vshrl.u32 %v408, 5
        %v410 = vand.u32 %v408, 31
        %v411 = vsub.s32 0, %v410
        %v412 = vsel %vm406, %v411, %v410
        %vm413 = vcmp.lt.s32.totalorder %v399, 0
        %v414 = vsub.s32 0, %v399
        %v415 = vsel %vm413, %v414, %v399
        %v416 = vshrl.u32 %v415, 5
        %v417 = vand.u32 %v415, 31
        %v418 = vsub.s32 0, %v417
        %v419 = vsel %vm413, %v418, %v417
        %vm420 = vcmp.lt.s32.totalorder %v400, 0
        %v421 = vsub.s32 0, %v400
        %v422 = vsel %vm420, %v421, %v400
        %v423 = vshrl.u32 %v422, 5
        %v424 = vand.u32 %v422, 31
        %v425 = vsub.s32 0, %v424
        %v426 = vsel %vm420, %v425, %v424
        %vm427 = vcmp.lt.s32.totalorder %v401, 0
        %v428 = vsub.s32 0, %v401
        %v429 = vsel %vm427, %v428, %v401
        %v430 = vshrl.u32 %v429, 5
        %v431 = vand.u32 %v429, 31
        %v432 = vsub.s32 0, %v431
        %v433 = vsel %vm427, %v432, %v431
        %vm434 = vcmp.lt.s32.totalorder %v402, 0
        %v435 = vsub.s32 0, %v402
        %v436 = vsel %vm434, %v435, %v402
        %v437 = vshrl.u32 %v436, 5
        %v438 = vand.u32 %v436, 31
        %v439 = vsub.s32 0, %v438
        %v440 = vsel %vm434, %v439, %v438
        %vm441 = vcmp.lt.s32.totalorder %v403, 0
        %v442 = vsub.s32 0, %v403
        %v443 = vsel %vm441, %v442, %v403
        %v444 = vshrl.u32 %v443, 5
        %v445 = vand.u32 %v443, 31
        %v446 = vsub.s32 0, %v445
        %v447 = vsel %vm441, %v446, %v445
        %vm448 = vcmp.lt.s32.totalorder %v404, 0
        %v449 = vsub.s32 0, %v404
        %v450 = vsel %vm448, %v449, %v404
        %v451 = vshrl.u32 %v450, 5
        %v452 = vand.u32 %v450, 31
        %v453 = vsub.s32 0, %v452
        %v454 = vsel %vm448, %v453, %v452
        %vm455 = vcmp.lt.s32.totalorder %v405, 0
        %v456 = vsub.s32 0, %v405
        %v457 = vsel %vm455, %v456, %v405
        %v458 = vshrl.u32 %v457, 5
        %v459 = vand.u32 %v457, 31
        %v460 = vsub.s32 0, %v459
        %v461 = vsel %vm455, %v460, %v459
        %vm462 = vcmp.ne.s32.totalorder %v412, 0
        %vm463 = vcmp.ne.s32.totalorder %v419, 0
        %vm464 = vcmp.ne.s32.totalorder %v426, 0
        %vm465 = vcmp.ne.s32.totalorder %v433, 0
        %vm466 = vcmp.ne.s32.totalorder %v440, 0
        %vm467 = vcmp.ne.s32.totalorder %v447, 0
        %vm468 = vcmp.ne.s32.totalorder %v454, 0
        %vm469 = vcmp.ne.s32.totalorder %v461, 0
        %vm470 = vcmp.lt.s32.totalorder %v412, 0
        %vm471 = vcmp.lt.s32.totalorder %v419, 0
        %vm472 = vcmp.lt.s32.totalorder %v426, 0
        %vm473 = vcmp.lt.s32.totalorder %v433, 0
        %vm474 = vcmp.lt.s32.totalorder %v440, 0
        %vm475 = vcmp.lt.s32.totalorder %v447, 0
        %vm476 = vcmp.lt.s32.totalorder %v454, 0
        %vm477 = vcmp.lt.s32.totalorder %v461, 0
        %vm478 = vmand %vm470, %vm462
        %vm479 = vmand %vm471, %vm463
        %vm480 = vmand %vm472, %vm464
        %vm481 = vmand %vm473, %vm465
        %vm482 = vmand %vm474, %vm466
        %vm483 = vmand %vm475, %vm467
        %vm484 = vmand %vm476, %vm468
        %vm485 = vmand %vm477, %vm469
        %v486 = vadd.s32 %v412, 32
        %v487 = vadd.s32 %v419, 32
        %v488 = vadd.s32 %v426, 32
        %v489 = vadd.s32 %v433, 32
        %v490 = vadd.s32 %v440, 32
        %v491 = vadd.s32 %v447, 32
        %v492 = vadd.s32 %v454, 32
        %v493 = vadd.s32 %v461, 32
        %v494 = vsel %vm478, %v486, %v412
        %v495 = vsel %vm479, %v487, %v419
        %v496 = vsel %vm480, %v488, %v426
        %v497 = vsel %vm481, %v489, %v433
        %v498 = vsel %vm482, %v490, %v440
        %v499 = vsel %vm483, %v491, %v447
        %v500 = vsel %vm484, %v492, %v454
        %v501 = vsel %vm485, %v493, %v461
        %vm502 = vcmp.ne.s32.totalorder %v494, 0
        %vm503 = vcmp.ne.s32.totalorder %v495, 0
        %vm504 = vcmp.ne.s32.totalorder %v496, 0
        %vm505 = vcmp.ne.s32.totalorder %v497, 0
        %vm506 = vcmp.ne.s32.totalorder %v498, 0
        %vm507 = vcmp.ne.s32.totalorder %v499, 0
        %vm508 = vcmp.ne.s32.totalorder %v500, 0
        %vm509 = vcmp.ne.s32.totalorder %v501, 0
        %vm510 = vcmp.ne.s32.totalorder %v494, 31
        %vm511 = vcmp.ne.s32.totalorder %v495, 31
        %vm512 = vcmp.ne.s32.totalorder %v496, 31
        %vm513 = vcmp.ne.s32.totalorder %v497, 31
        %vm514 = vcmp.ne.s32.totalorder %v498, 31
        %vm515 = vcmp.ne.s32.totalorder %v499, 31
        %vm516 = vcmp.ne.s32.totalorder %v500, 31
        %vm517 = vcmp.ne.s32.totalorder %v501, 31
        %vm518 = vcmask 265216
        %519 = vst.msk [vmem:[#allocation2] sm:$0xf] %vm518, 0
        %520 = vst.msk [vmem:[#allocation2 + $0x24] sm:$0xf] %vm518, 0
        %521 = vst.msk [vmem:[#allocation2 + $0x48] sm:$0xf] %vm518, 0
        %522 = vst.msk [vmem:[#allocation2 + $0x6c] sm:$0xf] %vm518, 0
        %523 = vst.msk [vmem:[#allocation2 + $0x90] sm:$0xf] %vm518, 0
        %524 = vst.msk [vmem:[#allocation2 + $0xb4] sm:$0xf] %vm518, 0
        %vm525 = vcmask 519416
        %526 = vst.msk [vmem:[#allocation2 + $0x20] sm:$0xf] %vm525, 0
        %527 = vst.msk [vmem:[#allocation2 + $0x44] sm:$0xf] %vm525, 0
        %528 = vst.msk [vmem:[#allocation2 + $0x68] sm:$0xf] %vm525, 0
        %529 = vst.msk [vmem:[#allocation2 + $0x8c] sm:$0xf] %vm525, 0
        %530 = vst.msk [vmem:[#allocation2 + $0xb0] sm:$0xf] %vm525, 0
        %531 = vst.msk [vmem:[#allocation2 + $0xd4] sm:$0xf] %vm525, 0
        %v532 = vsel %vm510, 1, 0
        %v533 = vsel %vm511, 1, 0
        %v534 = vsel %vm512, 1, 0
        %v535 = vsel %vm513, 1, 0
        %v536 = vsel %vm514, 1, 0
        %v537 = vsel %vm515, 1, 0
        %v538 = vsel %vm516, 1, 0
        %v539 = vsel %vm517, 1, 0
        %vm540 = vcmp.eq.s32.totalorder %v532, 1
        %vm541 = vcmp.eq.s32.totalorder %v533, 1
        %vm542 = vcmp.eq.s32.totalorder %v534, 1
        %vm543 = vcmp.eq.s32.totalorder %v535, 1
        %vm544 = vcmp.eq.s32.totalorder %v536, 1
        %vm545 = vcmp.eq.s32.totalorder %v537, 1
        %vm546 = vcmp.eq.s32.totalorder %v538, 1
        %vm547 = vcmp.eq.s32.totalorder %v539, 1
        %vm548 = vmpackc.low %vm541, %vm540
        %vm549 = vmpackc.low %vm543, %vm542
        %vm550 = vmpackc.low %vm545, %vm544
        %vm551 = vmpackc.low %vm547, %vm546
        %v552 = vsel %vm548, %v389, 0
        %v553 = vsel %vm549, %v390, 0
        %v554 = vsel %vm550, %v391, 0
        %v555 = vsel %vm551, %v392, 0
        %v556 = vsel %vm548, %v393, 0
        %v557 = vsel %vm549, %v394, 0
        %v558 = vsel %vm550, %v395, 0
        %v559 = vsel %vm551, %v396, 0
        %568 = vrot.lane.b32.xlu0 %v552, 33
        %v569 = vpop.permute.xlu0 %568
        %570 = vrot.lane.b32.xlu0 %v553, 33
        %v571 = vpop.permute.xlu0 %570
        %572 = vrot.lane.b32.xlu0 %v554, 33
        %v573 = vpop.permute.xlu0 %572
        %574 = vrot.lane.b32.xlu0 %v555, 33
        %v575 = vpop.permute.xlu0 %574
        %576 = vrot.lane.b32.xlu0 %v556, 33
        %v577 = vpop.permute.xlu0 %576
        %578 = vrot.lane.b32.xlu0 %v557, 33
        %v579 = vpop.permute.xlu0 %578
        %580 = vrot.lane.b32.xlu0 %v558, 33
        %v581 = vpop.permute.xlu0 %580
        %582 = vrot.lane.b32.xlu0 %v559, 33
        %v583 = vpop.permute.xlu0 %582
        %v584 = vrot.slane %v569, 4
        %v585 = vrot.slane %v571, 4
        %v586 = vrot.slane %v573, 4
        %v587 = vrot.slane %v575, 4
        %v588 = vrot.slane %v577, 4
        %v589 = vrot.slane %v579, 4
        %v590 = vrot.slane %v581, 4
        %v591 = vrot.slane %v583, 4
        %vm592 = vcmask 269312
        %v593 = vsel %vm592, %v584, %v569
        %vm594 = vcmask 1043456
        %v595 = vsel %vm594, %v584, %v585
        %v596 = vsel %vm592, %v595, %v571
        %v597 = vsel %vm594, %v585, %v586
        %v598 = vsel %vm592, %v597, %v573
        %v599 = vsel %vm594, %v586, %v587
        %v600 = vsel %vm592, %v599, %v575
        %v601 = vsel %vm592, %v588, %v577
        %v602 = vsel %vm594, %v588, %v589
        %v603 = vsel %vm592, %v602, %v579
        %v604 = vsel %vm594, %v589, %v590
        %v605 = vsel %vm592, %v604, %v581
        %v606 = vsel %vm594, %v590, %v591
        %v607 = vsel %vm592, %v606, %v583
        %vm618 = vcmask 1043720
        %vm619 = vcmask 1047556
        %vm620 = vmor %vm619, %vm618
        %621 = vst.msk [vmem:[#allocation2] sm:$0xff] %vm620, %v593
        %622 = vst [vmem:[#allocation2 + $0x8] sm:$0xff] %v596
        %623 = vst [vmem:[#allocation2 + $0x10] sm:$0xff] %v598
        %624 = vst [vmem:[#allocation2 + $0x18] sm:$0xff] %v600
        %625 = vst.msk [vmem:[#allocation2 + $0x20] sm:$0xf] %vm518, %v587
        %626 = vst.msk [vmem:[#allocation2 + $0x24] sm:$0xff] %vm620, %v601
        %627 = vst [vmem:[#allocation2 + $0x2c] sm:$0xff] %v603
        %628 = vst [vmem:[#allocation2 + $0x34] sm:$0xff] %v605
        %629 = vst [vmem:[#allocation2 + $0x3c] sm:$0xff] %v607
        %630 = vst.msk [vmem:[#allocation2 + $0x44] sm:$0xf] %vm518, %v591
        %639 = vrot.lane.b32.xlu0 %v389, 32
        %v640 = vpop.permute.xlu0 %639
        %641 = vrot.lane.b32.xlu0 %v390, 32
        %v642 = vpop.permute.xlu0 %641
        %643 = vrot.lane.b32.xlu0 %v391, 32
        %v644 = vpop.permute.xlu0 %643
        %645 = vrot.lane.b32.xlu0 %v392, 32
        %v646 = vpop.permute.xlu0 %645
        %647 = vrot.lane.b32.xlu0 %v393, 32
        %v648 = vpop.permute.xlu0 %647
        %649 = vrot.lane.b32.xlu0 %v394, 32
        %v650 = vpop.permute.xlu0 %649
        %651 = vrot.lane.b32.xlu0 %v395, 32
        %v652 = vpop.permute.xlu0 %651
        %653 = vrot.lane.b32.xlu0 %v396, 32
        %v654 = vpop.permute.xlu0 %653
        %v655 = vrot.slane %v640, 4
        %v656 = vrot.slane %v642, 4
        %v657 = vrot.slane %v644, 4
        %v658 = vrot.slane %v646, 4
        %v659 = vrot.slane %v648, 4
        %v660 = vrot.slane %v650, 4
        %v661 = vrot.slane %v652, 4
        %v662 = vrot.slane %v654, 4
        %vm663 = vcmask 261120
        %v664 = vsel %vm663, %v655, %v640
        %v665 = vsel %vm594, %v655, %v656
        %v666 = vsel %vm663, %v665, %v642
        %v667 = vsel %vm594, %v656, %v657
        %v668 = vsel %vm663, %v667, %v644
        %v669 = vsel %vm594, %v657, %v658
        %v670 = vsel %vm663, %v669, %v646
        %v671 = vsel %vm663, %v659, %v648
        %v672 = vsel %vm594, %v659, %v660
        %v673 = vsel %vm663, %v672, %v650
        %v674 = vsel %vm594, %v660, %v661
        %v675 = vsel %vm663, %v674, %v652
        %v676 = vsel %vm594, %v661, %v662
        %v677 = vsel %vm663, %v676, %v654
        %vm688 = vcmask 1043712
        %vm689 = vmor %vm619, %vm688
        %690 = vst.msk [vmem:[#allocation2 + $0x48] sm:$0xff] %vm689, %v664
        %691 = vst [vmem:[#allocation2 + $0x50] sm:$0xff] %v666
        %692 = vst [vmem:[#allocation2 + $0x58] sm:$0xff] %v668
        %693 = vst [vmem:[#allocation2 + $0x60] sm:$0xff] %v670
        %vm694 = vcmask 257024
        %695 = vst.msk [vmem:[#allocation2 + $0x68] sm:$0xf] %vm694, %v658
        %696 = vst.msk [vmem:[#allocation2 + $0x6c] sm:$0xff] %vm689, %v671
        %697 = vst [vmem:[#allocation2 + $0x74] sm:$0xff] %v673
        %698 = vst [vmem:[#allocation2 + $0x7c] sm:$0xff] %v675
        %699 = vst [vmem:[#allocation2 + $0x84] sm:$0xff] %v677
        %700 = vst.msk [vmem:[#allocation2 + $0x8c] sm:$0xf] %vm694, %v662
        %v701 = vsel %vm502, 1, 0
        %v702 = vsel %vm503, 1, 0
        %v703 = vsel %vm504, 1, 0
        %v704 = vsel %vm505, 1, 0
        %v705 = vsel %vm506, 1, 0
        %v706 = vsel %vm507, 1, 0
        %v707 = vsel %vm508, 1, 0
        %v708 = vsel %vm509, 1, 0
        %vm709 = vcmp.eq.s32.totalorder %v701, 1
        %vm710 = vcmp.eq.s32.totalorder %v702, 1
        %vm711 = vcmp.eq.s32.totalorder %v703, 1
        %vm712 = vcmp.eq.s32.totalorder %v704, 1
        %vm713 = vcmp.eq.s32.totalorder %v705, 1
        %vm714 = vcmp.eq.s32.totalorder %v706, 1
        %vm715 = vcmp.eq.s32.totalorder %v707, 1
        %vm716 = vcmp.eq.s32.totalorder %v708, 1
        %vm717 = vmpackc.low %vm710, %vm709
        %vm718 = vmpackc.low %vm712, %vm711
        %vm719 = vmpackc.low %vm714, %vm713
        %vm720 = vmpackc.low %vm716, %vm715
        %v721 = vsel %vm717, %v389, 0
        %v722 = vsel %vm718, %v390, 0
        %v723 = vsel %vm719, %v391, 0
        %v724 = vsel %vm720, %v392, 0
        %v725 = vsel %vm717, %v393, 0
        %v726 = vsel %vm718, %v394, 0
        %v727 = vsel %vm719, %v395, 0
        %v728 = vsel %vm720, %v396, 0
        %737 = vrot.lane.b32.xlu0 %v721, 31
        %v738 = vpop.permute.xlu0 %737
        %739 = vrot.lane.b32.xlu0 %v722, 31
        %v740 = vpop.permute.xlu0 %739
        %741 = vrot.lane.b32.xlu0 %v723, 31
        %v742 = vpop.permute.xlu0 %741
        %743 = vrot.lane.b32.xlu0 %v724, 31
        %v744 = vpop.permute.xlu0 %743
        %745 = vrot.lane.b32.xlu0 %v725, 31
        %v746 = vpop.permute.xlu0 %745
        %747 = vrot.lane.b32.xlu0 %v726, 31
        %v748 = vpop.permute.xlu0 %747
        %749 = vrot.lane.b32.xlu0 %v727, 31
        %v750 = vpop.permute.xlu0 %749
        %751 = vrot.lane.b32.xlu0 %v728, 31
        %v752 = vpop.permute.xlu0 %751
        %v753 = vrot.slane %v738, 4
        %v754 = vrot.slane %v740, 4
        %v755 = vrot.slane %v742, 4
        %v756 = vrot.slane %v744, 4
        %v757 = vrot.slane %v746, 4
        %v758 = vrot.slane %v748, 4
        %v759 = vrot.slane %v750, 4
        %v760 = vrot.slane %v752, 4
        %vm761 = vcmask 252928
        %v762 = vsel %vm761, %v753, %v738
        %v763 = vsel %vm594, %v753, %v754
        %v764 = vsel %vm761, %v763, %v740
        %v765 = vsel %vm594, %v754, %v755
        %v766 = vsel %vm761, %v765, %v742
        %v767 = vsel %vm594, %v755, %v756
        %v768 = vsel %vm761, %v767, %v744
        %v769 = vsel %vm761, %v757, %v746
        %v770 = vsel %vm594, %v757, %v758
        %v771 = vsel %vm761, %v770, %v748
        %v772 = vsel %vm594, %v758, %v759
        %v773 = vsel %vm761, %v772, %v750
        %v774 = vsel %vm594, %v759, %v760
        %v775 = vsel %vm761, %v774, %v752
        %vm786 = vcmask 1043704
        %vm787 = vmor %vm619, %vm786
        %788 = vst.msk [vmem:[#allocation2 + $0x90] sm:$0xff] %vm787, %v762
        %789 = vst [vmem:[#allocation2 + $0x98] sm:$0xff] %v764
        %790 = vst [vmem:[#allocation2 + $0xa0] sm:$0xff] %v766
        %791 = vst [vmem:[#allocation2 + $0xa8] sm:$0xff] %v768
        %vm792 = vcmask 248832
        %793 = vst.msk [vmem:[#allocation2 + $0xb0] sm:$0xf] %vm792, %v756
        %794 = vst.msk [vmem:[#allocation2 + $0xb4] sm:$0xff] %vm787, %v769
        %795 = vst [vmem:[#allocation2 + $0xbc] sm:$0xff] %v771
        %796 = vst [vmem:[#allocation2 + $0xc4] sm:$0xff] %v773
        %797 = vst [vmem:[#allocation2 + $0xcc] sm:$0xff] %v775
        %798 = vst.msk [vmem:[#allocation2 + $0xd4] sm:$0xf] %vm792, %v760
        %v799 = vld [vmem:[#allocation2] sm:$0xff]
        %v800 = vld [vmem:[#allocation2 + $0x8] sm:$0xff]
        %v801 = vld [vmem:[#allocation2 + $0x10] sm:$0xff]
        %v802 = vld [vmem:[#allocation2 + $0x18] sm:$0xff]
        %v803 = vld [vmem:[#allocation2 + $0x24] sm:$0xff]
        %v804 = vld [vmem:[#allocation2 + $0x2c] sm:$0xff]
        %v805 = vld [vmem:[#allocation2 + $0x34] sm:$0xff]
        %v806 = vld [vmem:[#allocation2 + $0x3c] sm:$0xff]
        %v807 = vld [vmem:[#allocation2 + $0x48] sm:$0xff]
        %v808 = vld [vmem:[#allocation2 + $0x50] sm:$0xff]
        %v809 = vld [vmem:[#allocation2 + $0x58] sm:$0xff]
        %v810 = vld [vmem:[#allocation2 + $0x60] sm:$0xff]
        %v811 = vld [vmem:[#allocation2 + $0x6c] sm:$0xff]
        %v812 = vld [vmem:[#allocation2 + $0x74] sm:$0xff]
        %v813 = vld [vmem:[#allocation2 + $0x7c] sm:$0xff]
        %v814 = vld [vmem:[#allocation2 + $0x84] sm:$0xff]
        %v815 = vld [vmem:[#allocation2 + $0x90] sm:$0xff]
        %v816 = vld [vmem:[#allocation2 + $0x98] sm:$0xff]
        %v817 = vld [vmem:[#allocation2 + $0xa0] sm:$0xff]
        %v818 = vld [vmem:[#allocation2 + $0xa8] sm:$0xff]
        %v819 = vld [vmem:[#allocation2 + $0xb4] sm:$0xff]
        %v820 = vld [vmem:[#allocation2 + $0xbc] sm:$0xff]
        %v821 = vld [vmem:[#allocation2 + $0xc4] sm:$0xff]
        %v822 = vld [vmem:[#allocation2 + $0xcc] sm:$0xff]
        %v823 = vld [vmem:[%s2] sm:$0xf]
        %v824 = vld [vmem:[%s2 + $0x4] sm:$0xf]
        %v825 = vld [vmem:[#allocation2 + $0x20] sm:$0xf]
        %v826 = vld [vmem:[#allocation2 + $0x44] sm:$0xf]
        %v827 = vld [vmem:[#allocation2 + $0x68] sm:$0xf]
        %v828 = vld [vmem:[#allocation2 + $0x8c] sm:$0xf]
        %v829 = vld [vmem:[#allocation2 + $0xb0] sm:$0xf]
        %v830 = vld [vmem:[#allocation2 + $0xd4] sm:$0xf]
        %s831 = scalar_lea.vmem %s2, 8
        %v832 = vld [vmem:[%s831] sm:$0xf]
        %v833 = vld [vmem:[%s831 + $0x4] sm:$0xf]
        %v836 = vunpack.c.l.b16 %v832
        %v837 = vunpack.c.l.b16 %v833
        %v838 = vpack.c.b16 %v837, %v836
        %v869 = vunpack.c.l.b16 %v799
        %v870 = vunpack.c.h.b16 %v799
        %v871 = vunpack.c.l.b16 %v800
        %v872 = vunpack.c.h.b16 %v800
        %v873 = vunpack.c.l.b16 %v801
        %v874 = vunpack.c.h.b16 %v801
        %v875 = vunpack.c.l.b16 %v802
        %v876 = vunpack.c.h.b16 %v802
        %v877 = vunpack.c.l.b16 %v825
        %v878 = vunpack.c.l.b16 %v803
        %v879 = vunpack.c.h.b16 %v803
        %v880 = vunpack.c.l.b16 %v804
        %v881 = vunpack.c.h.b16 %v804
        %v882 = vunpack.c.l.b16 %v805
        %v883 = vunpack.c.h.b16 %v805
        %v884 = vunpack.c.l.b16 %v806
        %v885 = vunpack.c.h.b16 %v806
        %v886 = vunpack.c.l.b16 %v826
        %v887 = vunpack.c.l.b16 %v807
        %v888 = vunpack.c.h.b16 %v807
        %v889 = vunpack.c.l.b16 %v808
        %v890 = vunpack.c.h.b16 %v808
        %v891 = vunpack.c.l.b16 %v809
        %v892 = vunpack.c.h.b16 %v809
        %v893 = vunpack.c.l.b16 %v810
        %v894 = vunpack.c.h.b16 %v810
        %v895 = vunpack.c.l.b16 %v827
        %v896 = vunpack.c.l.b16 %v811
        %v897 = vunpack.c.h.b16 %v811
        %v898 = vunpack.c.l.b16 %v812
        %v899 = vunpack.c.h.b16 %v812
        %v900 = vunpack.c.l.b16 %v813
        %v901 = vunpack.c.h.b16 %v813
        %v902 = vunpack.c.l.b16 %v814
        %v903 = vunpack.c.h.b16 %v814
        %v904 = vunpack.c.l.b16 %v828
        %v905 = vunpack.c.l.b16 %v815
        %v906 = vunpack.c.h.b16 %v815
        %v907 = vunpack.c.l.b16 %v816
        %v908 = vunpack.c.h.b16 %v816
        %v909 = vunpack.c.l.b16 %v817
        %v910 = vunpack.c.h.b16 %v817
        %v911 = vunpack.c.l.b16 %v818
        %v912 = vunpack.c.h.b16 %v818
        %v913 = vunpack.c.l.b16 %v829
        %v914 = vunpack.c.l.b16 %v819
        %v915 = vunpack.c.h.b16 %v819
        %v916 = vunpack.c.l.b16 %v820
        %v917 = vunpack.c.h.b16 %v820
        %v918 = vunpack.c.l.b16 %v821
        %v919 = vunpack.c.h.b16 %v821
        %v920 = vunpack.c.l.b16 %v822
        %v921 = vunpack.c.h.b16 %v822
        %v922 = vunpack.c.l.b16 %v830
        %v923 = vpack.c.b16 %v878, %v869
        %v924 = vpack.c.b16 %v879, %v870
        %v925 = vpack.c.b16 %v880, %v871
        %v926 = vpack.c.b16 %v881, %v872
        %v927 = vpack.c.b16 %v882, %v873
        %v928 = vpack.c.b16 %v883, %v874
        %v929 = vpack.c.b16 %v884, %v875
        %v930 = vpack.c.b16 %v885, %v876
        %v931 = vpack.c.b16 %v886, %v877
        %v932 = vpack.c.b16 %v896, %v887
        %v933 = vpack.c.b16 %v897, %v888
        %v934 = vpack.c.b16 %v898, %v889
        %v935 = vpack.c.b16 %v899, %v890
        %v936 = vpack.c.b16 %v900, %v891
        %v937 = vpack.c.b16 %v901, %v892
        %v938 = vpack.c.b16 %v902, %v893
        %v939 = vpack.c.b16 %v903, %v894
        %v940 = vpack.c.b16 %v904, %v895
        %v941 = vpack.c.b16 %v914, %v905
        %v942 = vpack.c.b16 %v915, %v906
        %v943 = vpack.c.b16 %v916, %v907
        %v944 = vpack.c.b16 %v917, %v908
        %v945 = vpack.c.b16 %v918, %v909
        %v946 = vpack.c.b16 %v919, %v910
        %v947 = vpack.c.b16 %v920, %v911
        %v948 = vpack.c.b16 %v921, %v912
        %v949 = vpack.c.b16 %v922, %v913
        %950 = vrot.lane.b32.xlu0 %v923, 96
        %v951 = vpop.permute.xlu0 %950
        %952 = vrot.lane.b32.xlu0 %v924, 96
        %v953 = vpop.permute.xlu0 %952
        %954 = vrot.lane.b32.xlu0 %v925, 96
        %v955 = vpop.permute.xlu0 %954
        %956 = vrot.lane.b32.xlu0 %v926, 96
        %v957 = vpop.permute.xlu0 %956
        %958 = vrot.lane.b32.xlu0 %v927, 96
        %v959 = vpop.permute.xlu0 %958
        %960 = vrot.lane.b32.xlu0 %v928, 96
        %v961 = vpop.permute.xlu0 %960
        %962 = vrot.lane.b32.xlu0 %v929, 96
        %v963 = vpop.permute.xlu0 %962
        %964 = vrot.lane.b32.xlu0 %v930, 96
        %v965 = vpop.permute.xlu0 %964
        %966 = vrot.lane.b32.xlu0 %v931, 96
        %v967 = vpop.permute.xlu0 %966
        %968 = vrot.lane.b32.xlu0 %v932, 96
        %v969 = vpop.permute.xlu0 %968
        %970 = vrot.lane.b32.xlu0 %v933, 96
        %v971 = vpop.permute.xlu0 %970
        %972 = vrot.lane.b32.xlu0 %v934, 96
        %v973 = vpop.permute.xlu0 %972
        %974 = vrot.lane.b32.xlu0 %v935, 96
        %v975 = vpop.permute.xlu0 %974
        %976 = vrot.lane.b32.xlu0 %v936, 96
        %v977 = vpop.permute.xlu0 %976
        %978 = vrot.lane.b32.xlu0 %v937, 96
        %v979 = vpop.permute.xlu0 %978
        %980 = vrot.lane.b32.xlu0 %v938, 96
        %v981 = vpop.permute.xlu0 %980
        %982 = vrot.lane.b32.xlu0 %v939, 96
        %v983 = vpop.permute.xlu0 %982
        %984 = vrot.lane.b32.xlu0 %v940, 96
        %v985 = vpop.permute.xlu0 %984
        %986 = vrot.lane.b32.xlu0 %v941, 96
        %v987 = vpop.permute.xlu0 %986
        %988 = vrot.lane.b32.xlu0 %v942, 96
        %v989 = vpop.permute.xlu0 %988
        %990 = vrot.lane.b32.xlu0 %v943, 96
        %v991 = vpop.permute.xlu0 %990
        %992 = vrot.lane.b32.xlu0 %v944, 96
        %v993 = vpop.permute.xlu0 %992
        %994 = vrot.lane.b32.xlu0 %v945, 96
        %v995 = vpop.permute.xlu0 %994
        %996 = vrot.lane.b32.xlu0 %v946, 96
        %v997 = vpop.permute.xlu0 %996
        %998 = vrot.lane.b32.xlu0 %v947, 96
        %v999 = vpop.permute.xlu0 %998
        %1000 = vrot.lane.b32.xlu0 %v948, 96
        %v1001 = vpop.permute.xlu0 %1000
        %1002 = vrot.lane.b32.xlu0 %v949, 96
        %v1003 = vpop.permute.xlu0 %1002
        %vm1004 = vcmask 785408
        %v1005 = vsel %vm1004, %v951, %v953
        %v1006 = vsel %vm1004, %v953, %v955
        %v1007 = vsel %vm1004, %v955, %v957
        %v1008 = vsel %vm1004, %v957, %v959
        %v1009 = vsel %vm1004, %v959, %v961
        %v1010 = vsel %vm1004, %v961, %v963
        %v1011 = vsel %vm1004, %v963, %v965
        %v1012 = vsel %vm1004, %v965, %v967
        %v1013 = vsel %vm1004, %v969, %v971
        %v1014 = vsel %vm1004, %v971, %v973
        %v1015 = vsel %vm1004, %v973, %v975
        %v1016 = vsel %vm1004, %v975, %v977
        %v1017 = vsel %vm1004, %v977, %v979
        %v1018 = vsel %vm1004, %v979, %v981
        %v1019 = vsel %vm1004, %v981, %v983
        %v1020 = vsel %vm1004, %v983, %v985
        %v1021 = vsel %vm1004, %v987, %v989
        %v1022 = vsel %vm1004, %v989, %v991
        %v1023 = vsel %vm1004, %v991, %v993
        %v1024 = vsel %vm1004, %v993, %v995
        %v1025 = vsel %vm1004, %v995, %v997
        %v1026 = vsel %vm1004, %v997, %v999
        %v1027 = vsel %vm1004, %v999, %v1001
        %v1028 = vsel %vm1004, %v1001, %v1003
        %vm1053 = vcmask 392192
        %v1055 = vsel %vm1053, %v838, 0
        %1057 = vmatpush.bf16.msra.mxu0 0
        %1058 = vmatpush.bf16.msra.mxu0 0
        %1059 = vmatpush.bf16.msra.mxu0 0
        %1060 = vmatpush.bf16.msra.mxu0 0
        %1061 = vmatpush.bf16.msra.mxu0 0
        %1062 = vmatpush.bf16.msra.mxu0 %v1021
        %1063 = vmatpush.bf16.msra.mxu0 %v1013
        %1064 = vmatpush.bf16.msra.mxu0 %v1005
        %1065 = vmatmul.bf16.gmra.mxu0 %v1055
        %v1066 = vpop.f32.mrf.mxu0
        %v1067 = vadd.f32 0.0, %v1066
        %v1068 = vpop.f32.mrf.mxu0
        %v1069 = vadd.f32 0.0, %v1068
        %1070 = vdwg.mxu0
        %1071 = vmatpush.bf16.msra.mxu0 0
        %1072 = vmatpush.bf16.msra.mxu0 0
        %1073 = vmatpush.bf16.msra.mxu0 0
        %1074 = vmatpush.bf16.msra.mxu0 0
        %1075 = vmatpush.bf16.msra.mxu0 0
        %1076 = vmatpush.bf16.msra.mxu0 %v1022
        %1077 = vmatpush.bf16.msra.mxu0 %v1014
        %1078 = vmatpush.bf16.msra.mxu0 %v1006
        %1079 = vmatmul.bf16.gmra.mxu0 %v1055
        %v1080 = vpop.f32.mrf.mxu0
        %v1081 = vadd.f32 0.0, %v1080
        %v1082 = vpop.f32.mrf.mxu0
        %v1083 = vadd.f32 0.0, %v1082
        %1084 = vdwg.mxu0
        %1085 = vmatpush.bf16.msra.mxu0 0
        %1086 = vmatpush.bf16.msra.mxu0 0
        %1087 = vmatpush.bf16.msra.mxu0 0
        %1088 = vmatpush.bf16.msra.mxu0 0
        %1089 = vmatpush.bf16.msra.mxu0 0
        %1090 = vmatpush.bf16.msra.mxu0 %v1023
        %1091 = vmatpush.bf16.msra.mxu0 %v1015
        %1092 = vmatpush.bf16.msra.mxu0 %v1007
        %1093 = vmatmul.bf16.gmra.mxu0 %v1055
        %v1094 = vpop.f32.mrf.mxu0
        %v1095 = vadd.f32 0.0, %v1094
        %v1096 = vpop.f32.mrf.mxu0
        %v1097 = vadd.f32 0.0, %v1096
        %1098 = vdwg.mxu0
        %1099 = vmatpush.bf16.msra.mxu0 0
        %1100 = vmatpush.bf16.msra.mxu0 0
        %1101 = vmatpush.bf16.msra.mxu0 0
        %1102 = vmatpush.bf16.msra.mxu0 0
        %1103 = vmatpush.bf16.msra.mxu0 0
        %1104 = vmatpush.bf16.msra.mxu0 %v1024
        %1105 = vmatpush.bf16.msra.mxu0 %v1016
        %1106 = vmatpush.bf16.msra.mxu0 %v1008
        %1107 = vmatmul.bf16.gmra.mxu0 %v1055
        %v1108 = vpop.f32.mrf.mxu0
        %v1109 = vadd.f32 0.0, %v1108
        %v1110 = vpop.f32.mrf.mxu0
        %v1111 = vadd.f32 0.0, %v1110
        %1112 = vdwg.mxu0
        %1113 = vmatpush.bf16.msra.mxu0 0
        %1114 = vmatpush.bf16.msra.mxu0 0
        %1115 = vmatpush.bf16.msra.mxu0 0
        %1116 = vmatpush.bf16.msra.mxu0 0
        %1117 = vmatpush.bf16.msra.mxu0 0
        %1118 = vmatpush.bf16.msra.mxu0 %v1025
        %1119 = vmatpush.bf16.msra.mxu0 %v1017
        %1120 = vmatpush.bf16.msra.mxu0 %v1009
        %1121 = vmatmul.bf16.gmra.mxu0 %v1055
        %v1122 = vpop.f32.mrf.mxu0
        %v1123 = vadd.f32 0.0, %v1122
        %v1124 = vpop.f32.mrf.mxu0
        %v1125 = vadd.f32 0.0, %v1124
        %1126 = vdwg.mxu0
        %1127 = vmatpush.bf16.msra.mxu0 0
        %1128 = vmatpush.bf16.msra.mxu0 0
        %1129 = vmatpush.bf16.msra.mxu0 0
        %1130 = vmatpush.bf16.msra.mxu0 0
        %1131 = vmatpush.bf16.msra.mxu0 0
        %1132 = vmatpush.bf16.msra.mxu0 %v1026
        %1133 = vmatpush.bf16.msra.mxu0 %v1018
        %1134 = vmatpush.bf16.msra.mxu0 %v1010
        %1135 = vmatmul.bf16.gmra.mxu0 %v1055
        %v1136 = vpop.f32.mrf.mxu0
        %v1137 = vadd.f32 0.0, %v1136
        %v1138 = vpop.f32.mrf.mxu0
        %v1139 = vadd.f32 0.0, %v1138
        %1140 = vdwg.mxu0
        %1141 = vmatpush.bf16.msra.mxu0 0
        %1142 = vmatpush.bf16.msra.mxu0 0
        %1143 = vmatpush.bf16.msra.mxu0 0
        %1144 = vmatpush.bf16.msra.mxu0 0
        %1145 = vmatpush.bf16.msra.mxu0 0
        %1146 = vmatpush.bf16.msra.mxu0 %v1027
        %1147 = vmatpush.bf16.msra.mxu0 %v1019
        %1148 = vmatpush.bf16.msra.mxu0 %v1011
        %1149 = vmatmul.bf16.gmra.mxu0 %v1055
        %v1150 = vpop.f32.mrf.mxu0
        %v1151 = vadd.f32 0.0, %v1150
        %v1152 = vpop.f32.mrf.mxu0
        %v1153 = vadd.f32 0.0, %v1152
        %1154 = vdwg.mxu0
        %1155 = vmatpush.bf16.msra.mxu0 0
        %1156 = vmatpush.bf16.msra.mxu0 0
        %1157 = vmatpush.bf16.msra.mxu0 0
        %1158 = vmatpush.bf16.msra.mxu0 0
        %1159 = vmatpush.bf16.msra.mxu0 0
        %1160 = vmatpush.bf16.msra.mxu0 %v1028
        %1161 = vmatpush.bf16.msra.mxu0 %v1020
        %1162 = vmatpush.bf16.msra.mxu0 %v1012
        %1163 = vmatmul.bf16.gmra.mxu0 %v1055
        %v1164 = vpop.f32.mrf.mxu0
        %v1165 = vadd.f32 0.0, %v1164
        %v1166 = vpop.f32.mrf.mxu0
        %v1167 = vadd.f32 0.0, %v1166
        %1168 = vdwg.mxu0
        %v1171 = vunpack.c.l.b16 %v823
        %v1172 = vunpack.c.l.b16 %v824
        %v1173 = vpack.c.b16 %v1172, %v1171
        %v1199 = vsel %vm1053, %v1173, 0
        %1201 = vmatpush.bf16.msra.mxu0 0
        %1202 = vmatpush.bf16.msra.mxu0 0
        %1203 = vmatpush.bf16.msra.mxu0 0
        %1204 = vmatpush.bf16.msra.mxu0 0
        %1205 = vmatpush.bf16.msra.mxu0 0
        %1206 = vmatpush.bf16.msra.mxu0 %v941
        %1207 = vmatpush.bf16.msra.mxu0 %v932
        %1208 = vmatpush.bf16.msra.mxu0 %v923
        %1209 = vmatmul.bf16.gmra.mxu0 %v1199
        %v1210 = vpop.f32.mrf.mxu0
        %v1211 = vadd.f32 %v1067, %v1210
        %v1212 = vpop.f32.mrf.mxu0
        %v1213 = vadd.f32 %v1069, %v1212
        %1214 = vdwg.mxu0
        %1215 = vmatpush.bf16.msra.mxu0 0
        %1216 = vmatpush.bf16.msra.mxu0 0
        %1217 = vmatpush.bf16.msra.mxu0 0
        %1218 = vmatpush.bf16.msra.mxu0 0
        %1219 = vmatpush.bf16.msra.mxu0 0
        %1220 = vmatpush.bf16.msra.mxu0 %v942
        %1221 = vmatpush.bf16.msra.mxu0 %v933
        %1222 = vmatpush.bf16.msra.mxu0 %v924
        %1223 = vmatmul.bf16.gmra.mxu0 %v1199
        %v1224 = vpop.f32.mrf.mxu0
        %v1225 = vadd.f32 %v1081, %v1224
        %v1226 = vpop.f32.mrf.mxu0
        %v1227 = vadd.f32 %v1083, %v1226
        %1228 = vdwg.mxu0
        %1229 = vmatpush.bf16.msra.mxu0 0
        %1230 = vmatpush.bf16.msra.mxu0 0
        %1231 = vmatpush.bf16.msra.mxu0 0
        %1232 = vmatpush.bf16.msra.mxu0 0
        %1233 = vmatpush.bf16.msra.mxu0 0
        %1234 = vmatpush.bf16.msra.mxu0 %v943
        %1235 = vmatpush.bf16.msra.mxu0 %v934
        %1236 = vmatpush.bf16.msra.mxu0 %v925
        %1237 = vmatmul.bf16.gmra.mxu0 %v1199
        %v1238 = vpop.f32.mrf.mxu0
        %v1239 = vadd.f32 %v1095, %v1238
        %v1240 = vpop.f32.mrf.mxu0
        %v1241 = vadd.f32 %v1097, %v1240
        %1242 = vdwg.mxu0
        %1243 = vmatpush.bf16.msra.mxu0 0
        %1244 = vmatpush.bf16.msra.mxu0 0
        %1245 = vmatpush.bf16.msra.mxu0 0
        %1246 = vmatpush.bf16.msra.mxu0 0
        %1247 = vmatpush.bf16.msra.mxu0 0
        %1248 = vmatpush.bf16.msra.mxu0 %v944
        %1249 = vmatpush.bf16.msra.mxu0 %v935
        %1250 = vmatpush.bf16.msra.mxu0 %v926
        %1251 = vmatmul.bf16.gmra.mxu0 %v1199
        %v1252 = vpop.f32.mrf.mxu0
        %v1253 = vadd.f32 %v1109, %v1252
        %v1254 = vpop.f32.mrf.mxu0
        %v1255 = vadd.f32 %v1111, %v1254
        %1256 = vdwg.mxu0
        %1257 = vmatpush.bf16.msra.mxu0 0
        %1258 = vmatpush.bf16.msra.mxu0 0
        %1259 = vmatpush.bf16.msra.mxu0 0
        %1260 = vmatpush.bf16.msra.mxu0 0
        %1261 = vmatpush.bf16.msra.mxu0 0
        %1262 = vmatpush.bf16.msra.mxu0 %v945
        %1263 = vmatpush.bf16.msra.mxu0 %v936
        %1264 = vmatpush.bf16.msra.mxu0 %v927
        %1265 = vmatmul.bf16.gmra.mxu0 %v1199
        %v1266 = vpop.f32.mrf.mxu0
        %v1267 = vadd.f32 %v1123, %v1266
        %v1268 = vpop.f32.mrf.mxu0
        %v1269 = vadd.f32 %v1125, %v1268
        %1270 = vdwg.mxu0
        %1271 = vmatpush.bf16.msra.mxu0 0
        %1272 = vmatpush.bf16.msra.mxu0 0
        %1273 = vmatpush.bf16.msra.mxu0 0
        %1274 = vmatpush.bf16.msra.mxu0 0
        %1275 = vmatpush.bf16.msra.mxu0 0
        %1276 = vmatpush.bf16.msra.mxu0 %v946
        %1277 = vmatpush.bf16.msra.mxu0 %v937
        %1278 = vmatpush.bf16.msra.mxu0 %v928
        %1279 = vmatmul.bf16.gmra.mxu0 %v1199
        %v1280 = vpop.f32.mrf.mxu0
        %v1281 = vadd.f32 %v1137, %v1280
        %v1282 = vpop.f32.mrf.mxu0
        %v1283 = vadd.f32 %v1139, %v1282
        %1284 = vdwg.mxu0
        %1285 = vmatpush.bf16.msra.mxu0 0
        %1286 = vmatpush.bf16.msra.mxu0 0
        %1287 = vmatpush.bf16.msra.mxu0 0
        %1288 = vmatpush.bf16.msra.mxu0 0
        %1289 = vmatpush.bf16.msra.mxu0 0
        %1290 = vmatpush.bf16.msra.mxu0 %v947
        %1291 = vmatpush.bf16.msra.mxu0 %v938
        %1292 = vmatpush.bf16.msra.mxu0 %v929
        %1293 = vmatmul.bf16.gmra.mxu0 %v1199
        %v1294 = vpop.f32.mrf.mxu0
        %v1295 = vadd.f32 %v1151, %v1294
        %v1296 = vpop.f32.mrf.mxu0
        %v1297 = vadd.f32 %v1153, %v1296
        %1298 = vdwg.mxu0
        %1299 = vmatpush.bf16.msra.mxu0 0
        %1300 = vmatpush.bf16.msra.mxu0 0
        %1301 = vmatpush.bf16.msra.mxu0 0
        %1302 = vmatpush.bf16.msra.mxu0 0
        %1303 = vmatpush.bf16.msra.mxu0 0
        %1304 = vmatpush.bf16.msra.mxu0 %v948
        %1305 = vmatpush.bf16.msra.mxu0 %v939
        %1306 = vmatpush.bf16.msra.mxu0 %v930
        %1307 = vmatmul.bf16.gmra.mxu0 %v1199
        %v1308 = vpop.f32.mrf.mxu0
        %v1309 = vadd.f32 %v1165, %v1308
        %v1310 = vpop.f32.mrf.mxu0
        %v1311 = vadd.f32 %v1167, %v1310
        %1312 = vdwg.mxu0
        %s1313 = scalar_lea.vmem %s2, 16
        %v1314 = vld [vmem:[%s1313] sm:$0xf]
        %v1315 = vld [vmem:[%s1313 + $0x4] sm:$0xf]
        %v1318 = vunpack.c.l.b16 %v1314
        %v1319 = vunpack.c.l.b16 %v1315
        %v1320 = vpack.c.b16 %v1319, %v1318
        %1321 = vrot.lane.b32.xlu0 %v923, 64
        %v1322 = vpop.permute.xlu0 %1321
        %1323 = vrot.lane.b32.xlu0 %v924, 64
        %v1324 = vpop.permute.xlu0 %1323
        %1325 = vrot.lane.b32.xlu0 %v925, 64
        %v1326 = vpop.permute.xlu0 %1325
        %1327 = vrot.lane.b32.xlu0 %v926, 64
        %v1328 = vpop.permute.xlu0 %1327
        %1329 = vrot.lane.b32.xlu0 %v927, 64
        %v1330 = vpop.permute.xlu0 %1329
        %1331 = vrot.lane.b32.xlu0 %v928, 64
        %v1332 = vpop.permute.xlu0 %1331
        %1333 = vrot.lane.b32.xlu0 %v929, 64
        %v1334 = vpop.permute.xlu0 %1333
        %1335 = vrot.lane.b32.xlu0 %v930, 64
        %v1336 = vpop.permute.xlu0 %1335
        %1337 = vrot.lane.b32.xlu0 %v931, 64
        %v1338 = vpop.permute.xlu0 %1337
        %1339 = vrot.lane.b32.xlu0 %v932, 64
        %v1340 = vpop.permute.xlu0 %1339
        %1341 = vrot.lane.b32.xlu0 %v933, 64
        %v1342 = vpop.permute.xlu0 %1341
        %1343 = vrot.lane.b32.xlu0 %v934, 64
        %v1344 = vpop.permute.xlu0 %1343
        %1345 = vrot.lane.b32.xlu0 %v935, 64
        %v1346 = vpop.permute.xlu0 %1345
        %1347 = vrot.lane.b32.xlu0 %v936, 64
        %v1348 = vpop.permute.xlu0 %1347
        %1349 = vrot.lane.b32.xlu0 %v937, 64
        %v1350 = vpop.permute.xlu0 %1349
        %1351 = vrot.lane.b32.xlu0 %v938, 64
        %v1352 = vpop.permute.xlu0 %1351
        %1353 = vrot.lane.b32.xlu0 %v939, 64
        %v1354 = vpop.permute.xlu0 %1353
        %1355 = vrot.lane.b32.xlu0 %v940, 64
        %v1356 = vpop.permute.xlu0 %1355
        %1357 = vrot.lane.b32.xlu0 %v941, 64
        %v1358 = vpop.permute.xlu0 %1357
        %1359 = vrot.lane.b32.xlu0 %v942, 64
        %v1360 = vpop.permute.xlu0 %1359
        %1361 = vrot.lane.b32.xlu0 %v943, 64
        %v1362 = vpop.permute.xlu0 %1361
        %1363 = vrot.lane.b32.xlu0 %v944, 64
        %v1364 = vpop.permute.xlu0 %1363
        %1365 = vrot.lane.b32.xlu0 %v945, 64
        %v1366 = vpop.permute.xlu0 %1365
        %1367 = vrot.lane.b32.xlu0 %v946, 64
        %v1368 = vpop.permute.xlu0 %1367
        %1369 = vrot.lane.b32.xlu0 %v947, 64
        %v1370 = vpop.permute.xlu0 %1369
        %1371 = vrot.lane.b32.xlu0 %v948, 64
        %v1372 = vpop.permute.xlu0 %1371
        %1373 = vrot.lane.b32.xlu0 %v949, 64
        %v1374 = vpop.permute.xlu0 %1373
        %vm1375 = vcmask 523264
        %v1376 = vsel %vm1375, %v1322, %v1324
        %v1377 = vsel %vm1375, %v1324, %v1326
        %v1378 = vsel %vm1375, %v1326, %v1328
        %v1379 = vsel %vm1375, %v1328, %v1330
        %v1380 = vsel %vm1375, %v1330, %v1332
        %v1381 = vsel %vm1375, %v1332, %v1334
        %v1382 = vsel %vm1375, %v1334, %v1336
        %v1383 = vsel %vm1375, %v1336, %v1338
        %v1384 = vsel %vm1375, %v1340, %v1342
        %v1385 = vsel %vm1375, %v1342, %v1344
        %v1386 = vsel %vm1375, %v1344, %v1346
        %v1387 = vsel %vm1375, %v1346, %v1348
        %v1388 = vsel %vm1375, %v1348, %v1350
        %v1389 = vsel %vm1375, %v1350, %v1352
        %v1390 = vsel %vm1375, %v1352, %v1354
        %v1391 = vsel %vm1375, %v1354, %v1356
        %v1392 = vsel %vm1375, %v1358, %v1360
        %v1393 = vsel %vm1375, %v1360, %v1362
        %v1394 = vsel %vm1375, %v1362, %v1364
        %v1395 = vsel %vm1375, %v1364, %v1366
        %v1396 = vsel %vm1375, %v1366, %v1368
        %v1397 = vsel %vm1375, %v1368, %v1370
        %v1398 = vsel %vm1375, %v1370, %v1372
        %v1399 = vsel %vm1375, %v1372, %v1374
        %v1425 = vsel %vm1053, %v1320, 0
        %1427 = vmatpush.bf16.msra.mxu0 0
        %1428 = vmatpush.bf16.msra.mxu0 0
        %1429 = vmatpush.bf16.msra.mxu0 0
        %1430 = vmatpush.bf16.msra.mxu0 0
        %1431 = vmatpush.bf16.msra.mxu0 0
        %1432 = vmatpush.bf16.msra.mxu0 %v1392
        %1433 = vmatpush.bf16.msra.mxu0 %v1384
        %1434 = vmatpush.bf16.msra.mxu0 %v1376
        %1435 = vmatmul.bf16.gmra.mxu0 %v1425
        %v1436 = vpop.f32.mrf.mxu0
        %v1437 = vadd.f32 0.0, %v1436
        %v1438 = vpop.f32.mrf.mxu0
        %v1439 = vadd.f32 0.0, %v1438
        %1440 = vdwg.mxu0
        %1441 = vmatpush.bf16.msra.mxu0 0
        %1442 = vmatpush.bf16.msra.mxu0 0
        %1443 = vmatpush.bf16.msra.mxu0 0
        %1444 = vmatpush.bf16.msra.mxu0 0
        %1445 = vmatpush.bf16.msra.mxu0 0
        %1446 = vmatpush.bf16.msra.mxu0 %v1393
        %1447 = vmatpush.bf16.msra.mxu0 %v1385
        %1448 = vmatpush.bf16.msra.mxu0 %v1377
        %1449 = vmatmul.bf16.gmra.mxu0 %v1425
        %v1450 = vpop.f32.mrf.mxu0
        %v1451 = vadd.f32 0.0, %v1450
        %v1452 = vpop.f32.mrf.mxu0
        %v1453 = vadd.f32 0.0, %v1452
        %1454 = vdwg.mxu0
        %1455 = vmatpush.bf16.msra.mxu0 0
        %1456 = vmatpush.bf16.msra.mxu0 0
        %1457 = vmatpush.bf16.msra.mxu0 0
        %1458 = vmatpush.bf16.msra.mxu0 0
        %1459 = vmatpush.bf16.msra.mxu0 0
        %1460 = vmatpush.bf16.msra.mxu0 %v1394
        %1461 = vmatpush.bf16.msra.mxu0 %v1386
        %1462 = vmatpush.bf16.msra.mxu0 %v1378
        %1463 = vmatmul.bf16.gmra.mxu0 %v1425
        %v1464 = vpop.f32.mrf.mxu0
        %v1465 = vadd.f32 0.0, %v1464
        %v1466 = vpop.f32.mrf.mxu0
        %v1467 = vadd.f32 0.0, %v1466
        %1468 = vdwg.mxu0
        %1469 = vmatpush.bf16.msra.mxu0 0
        %1470 = vmatpush.bf16.msra.mxu0 0
        %1471 = vmatpush.bf16.msra.mxu0 0
        %1472 = vmatpush.bf16.msra.mxu0 0
        %1473 = vmatpush.bf16.msra.mxu0 0
        %1474 = vmatpush.bf16.msra.mxu0 %v1395
        %1475 = vmatpush.bf16.msra.mxu0 %v1387
        %1476 = vmatpush.bf16.msra.mxu0 %v1379
        %1477 = vmatmul.bf16.gmra.mxu0 %v1425
        %v1478 = vpop.f32.mrf.mxu0
        %v1479 = vadd.f32 0.0, %v1478
        %v1480 = vpop.f32.mrf.mxu0
        %v1481 = vadd.f32 0.0, %v1480
        %1482 = vdwg.mxu0
        %1483 = vmatpush.bf16.msra.mxu0 0
        %1484 = vmatpush.bf16.msra.mxu0 0
        %1485 = vmatpush.bf16.msra.mxu0 0
        %1486 = vmatpush.bf16.msra.mxu0 0
        %1487 = vmatpush.bf16.msra.mxu0 0
        %1488 = vmatpush.bf16.msra.mxu0 %v1396
        %1489 = vmatpush.bf16.msra.mxu0 %v1388
        %1490 = vmatpush.bf16.msra.mxu0 %v1380
        %1491 = vmatmul.bf16.gmra.mxu0 %v1425
        %v1492 = vpop.f32.mrf.mxu0
        %v1493 = vadd.f32 0.0, %v1492
        %v1494 = vpop.f32.mrf.mxu0
        %v1495 = vadd.f32 0.0, %v1494
        %1496 = vdwg.mxu0
        %1497 = vmatpush.bf16.msra.mxu0 0
        %1498 = vmatpush.bf16.msra.mxu0 0
        %1499 = vmatpush.bf16.msra.mxu0 0
        %1500 = vmatpush.bf16.msra.mxu0 0
        %1501 = vmatpush.bf16.msra.mxu0 0
        %1502 = vmatpush.bf16.msra.mxu0 %v1397
        %1503 = vmatpush.bf16.msra.mxu0 %v1389
        %1504 = vmatpush.bf16.msra.mxu0 %v1381
        %1505 = vmatmul.bf16.gmra.mxu0 %v1425
        %v1506 = vpop.f32.mrf.mxu0
        %v1507 = vadd.f32 0.0, %v1506
        %v1508 = vpop.f32.mrf.mxu0
        %v1509 = vadd.f32 0.0, %v1508
        %1510 = vdwg.mxu0
        %1511 = vmatpush.bf16.msra.mxu0 0
        %1512 = vmatpush.bf16.msra.mxu0 0
        %1513 = vmatpush.bf16.msra.mxu0 0
        %1514 = vmatpush.bf16.msra.mxu0 0
        %1515 = vmatpush.bf16.msra.mxu0 0
        %1516 = vmatpush.bf16.msra.mxu0 %v1398
        %1517 = vmatpush.bf16.msra.mxu0 %v1390
        %1518 = vmatpush.bf16.msra.mxu0 %v1382
        %1519 = vmatmul.bf16.gmra.mxu0 %v1425
        %v1520 = vpop.f32.mrf.mxu0
        %v1521 = vadd.f32 0.0, %v1520
        %v1522 = vpop.f32.mrf.mxu0
        %v1523 = vadd.f32 0.0, %v1522
        %1524 = vdwg.mxu0
        %1525 = vmatpush.bf16.msra.mxu0 0
        %1526 = vmatpush.bf16.msra.mxu0 0
        %1527 = vmatpush.bf16.msra.mxu0 0
        %1528 = vmatpush.bf16.msra.mxu0 0
        %1529 = vmatpush.bf16.msra.mxu0 0
        %1530 = vmatpush.bf16.msra.mxu0 %v1399
        %1531 = vmatpush.bf16.msra.mxu0 %v1391
        %1532 = vmatpush.bf16.msra.mxu0 %v1383
        %1533 = vmatmul.bf16.gmra.mxu0 %v1425
        %v1534 = vpop.f32.mrf.mxu0
        %v1535 = vadd.f32 0.0, %v1534
        %v1536 = vpop.f32.mrf.mxu0
        %v1537 = vadd.f32 0.0, %v1536
        %1538 = vdwg.mxu0
        %v1539 = vadd.f32 %v1211, %v1437
        %v1540 = vadd.f32 %v1225, %v1451
        %v1541 = vadd.f32 %v1239, %v1465
        %v1542 = vadd.f32 %v1253, %v1479
        %v1543 = vadd.f32 %v1267, %v1493
        %v1544 = vadd.f32 %v1281, %v1507
        %v1545 = vadd.f32 %v1295, %v1521
        %v1546 = vadd.f32 %v1309, %v1535
        %v1547 = vadd.f32 %v1213, %v1439
        %v1548 = vadd.f32 %v1227, %v1453
        %v1549 = vadd.f32 %v1241, %v1467
        %v1550 = vadd.f32 %v1255, %v1481
        %v1551 = vadd.f32 %v1269, %v1495
        %v1552 = vadd.f32 %v1283, %v1509
        %v1553 = vadd.f32 %v1297, %v1523
        %v1554 = vadd.f32 %v1311, %v1537
        %v1555 = vld [vmem:[%s3] sm:$0xff]
        %v1556 = vld [vmem:[%s3 + $0x8] sm:$0xff]
        %v1557 = vadd.f32 %v1539, %v1540
        %v1558 = vadd.f32 %v1557, %v1541
        %v1559 = vadd.f32 %v1558, %v1542
        %v1560 = vadd.f32 %v1559, %v1543
        %v1561 = vadd.f32 %v1560, %v1544
        %v1562 = vadd.f32 %v1561, %v1545
        %v1563 = vadd.f32 %v1562, %v1546
        %1564 = vadd.xlane.f32.xlu0 %v1563
        %v1565 = vpop.xlane.xlu0 %1564
        %v1566 = vadd.f32 %v1547, %v1548
        %v1567 = vadd.f32 %v1566, %v1549
        %v1568 = vadd.f32 %v1567, %v1550
        %v1569 = vadd.f32 %v1568, %v1551
        %v1570 = vadd.f32 %v1569, %v1552
        %v1571 = vadd.f32 %v1570, %v1553
        %v1572 = vadd.f32 %v1571, %v1554
        %1573 = vadd.xlane.f32.xlu0 %v1572
        %v1574 = vpop.xlane.xlu0 %1573
        %v1575 = vmul.f32 %v1539, %v1539
        %v1576 = vmul.f32 %v1540, %v1540
        %v1577 = vmul.f32 %v1541, %v1541
        %v1578 = vmul.f32 %v1542, %v1542
        %v1579 = vmul.f32 %v1543, %v1543
        %v1580 = vmul.f32 %v1544, %v1544
        %v1581 = vmul.f32 %v1545, %v1545
        %v1582 = vmul.f32 %v1546, %v1546
        %v1583 = vmul.f32 %v1547, %v1547
        %v1584 = vmul.f32 %v1548, %v1548
        %v1585 = vmul.f32 %v1549, %v1549
        %v1586 = vmul.f32 %v1550, %v1550
        %v1587 = vmul.f32 %v1551, %v1551
        %v1588 = vmul.f32 %v1552, %v1552
        %v1589 = vmul.f32 %v1553, %v1553
        %v1590 = vmul.f32 %v1554, %v1554
        %v1591 = vadd.f32 %v1575, %v1576
        %v1592 = vadd.f32 %v1591, %v1577
        %v1593 = vadd.f32 %v1592, %v1578
        %v1594 = vadd.f32 %v1593, %v1579
        %v1595 = vadd.f32 %v1594, %v1580
        %v1596 = vadd.f32 %v1595, %v1581
        %v1597 = vadd.f32 %v1596, %v1582
        %1598 = vadd.xlane.f32.xlu0 %v1597
        %v1599 = vpop.xlane.xlu0 %1598
        %v1600 = vadd.f32 %v1583, %v1584
        %v1601 = vadd.f32 %v1600, %v1585
        %v1602 = vadd.f32 %v1601, %v1586
        %v1603 = vadd.f32 %v1602, %v1587
        %v1604 = vadd.f32 %v1603, %v1588
        %v1605 = vadd.f32 %v1604, %v1589
        %v1606 = vadd.f32 %v1605, %v1590
        %1607 = vadd.xlane.f32.xlu0 %v1606
        %v1608 = vpop.xlane.xlu0 %1607
        %v1609 = vmul.f32 %v1555, 1024.0
        %v1610 = vmul.f32 %v1556, 1024.0
        %v1611 = vadd.f32 %v1565, %v1609
        %v1612 = vadd.f32 %v1574, %v1610
        %v1613 = vmul.f32 %v1555, 2.0
        %v1614 = vmul.f32 %v1556, 2.0
        %v1615 = vmul.f32 %v1613, %v1565
        %v1616 = vmul.f32 %v1614, %v1574
        %v1617 = vadd.f32 %v1599, %v1615
        %v1618 = vadd.f32 %v1608, %v1616
        %v1619 = vmul.f32 %v1555, %v1555
        %v1620 = vmul.f32 %v1556, %v1556
        %v1621 = vmul.f32 %v1619, 1024.0
        %v1622 = vmul.f32 %v1620, 1024.0
        %v1623 = vadd.f32 %v1617, %v1621
        %v1624 = vadd.f32 %v1618, %v1622
        %v1625 = vld [vmem:[%s7] sm:$0xff]
        %1628 = vrot.lane.b32.xlu0 %v1623, 1
        %v1629 = vpop.permute.xlu0 %1628
        %1630 = vrot.lane.b32.xlu0 %v1624, 1
        %v1631 = vpop.permute.xlu0 %1630
        %vm1634 = vcmask 7168
        %v1635 = vsel %vm1634, %v1611, %v1629
        %v1636 = vsel %vm1634, %v1612, %v1631
        %vm1637 = vcmask 130048
        %v1639 = vsel %vm1637, %v1625, 0
        %1641 = vmatpush.msra.mxu0 0.0
        %1642 = vmatpush.msra.mxu0 0.0
        %1643 = vmatpush.msra.mxu0 0.0
        %1644 = vmatpush.msra.mxu0 0.0
        %1645 = vmatpush.msra.mxu0 0.0
        %1646 = vmatpush.msra.mxu0 0.0
        %1647 = vmatpush.msra.mxu0 0.0
        %1648 = vmatpush.msra.mxu0 0.0
        %1649 = vmatpush.msra.mxu0 0.0
        %1650 = vmatpush.msra.mxu0 0.0
        %1651 = vmatpush.msra.mxu0 0.0
        %1652 = vmatpush.msra.mxu0 0.0
        %1653 = vmatpush.msra.mxu0 0.0
        %1654 = vmatpush.msra.mxu0 0.0
        %1655 = vmatpush.msra.mxu0 %v1636
        %1656 = vmatpush.msra.mxu0 %v1635
        %1657 = vmatmul.f32.gmra.mxu0 %v1639
        %v1658 = vpop.f32.mrf.mxu0
        %v1659 = vadd.f32 0.0, %v1658
        %1660 = vdwg.mxu0
        %v1661 = vrcp.pop 2048.0
        %v1662 = vmul.f32 2048.0, %v1661
        %v1663 = vsub.f32 1.0, %v1662
        %v1664 = vmul.f32 %v1661, %v1663
        %v1665 = vadd.f32 %v1661, %v1664
        %vm1666 = vweird.f32 %v1661
        %v1667 = vsel %vm1666, %v1661, %v1665
        %v1668 = vmul.f32 %v1659, %v1667
        %v1669 = vmul.f32 %v1668, %v1668
        %1671 = vrot.lane.b32.xlu0 %v1669, 1
        %v1672 = vpop.permute.xlu0 %1671
        %v1674 = vsub.f32 %v1668, %v1672
        %v1675 = vmax.f32 %v1674, 0.0
        %v1676 = vadd.f32 %v1675, 1e-05
        %v1677 = vrsqrt.pop %v1676
        %v1678 = vmul.f32 %v1677, %v1676
        %v1679 = vmul.f32 %v1678, %v1677
        %v1680 = vmul.f32 0.5, %v1679
        %v1681 = vsub.f32 1.5, %v1680
        %v1682 = vmul.f32 %v1677, %v1681
        %vm1683 = vweird.f32 %v1676
        %vm1684 = vweird.f32 %v1677
        %vm1685 = vmor %vm1683, %vm1684
        %v1686 = vsel %vm1685, %v1677, %v1682
        %v1687 = vld [vmem:[%s6] sm:$0xff]
        %v1688 = vld [vmem:[%s6 + $0x8] sm:$0xff]
        %v1689 = vsel %vm1634, %v1668, %v1686
        %vm1690 = vcmask 64512
        %v1692 = vsel %vm1690, %v1687, 0
        %v1695 = vsel %vm1690, %v1688, 0
        %1697 = vmatpush.msra.mxu0 0.0
        %1698 = vmatpush.msra.mxu0 0.0
        %1699 = vmatpush.msra.mxu0 0.0
        %1700 = vmatpush.msra.mxu0 0.0
        %1701 = vmatpush.msra.mxu0 0.0
        %1702 = vmatpush.msra.mxu0 0.0
        %1703 = vmatpush.msra.mxu0 0.0
        %1704 = vmatpush.msra.mxu0 0.0
        %1705 = vmatpush.msra.mxu0 0.0
        %1706 = vmatpush.msra.mxu0 0.0
        %1707 = vmatpush.msra.mxu0 0.0
        %1708 = vmatpush.msra.mxu0 0.0
        %1709 = vmatpush.msra.mxu0 0.0
        %1710 = vmatpush.msra.mxu0 0.0
        %1711 = vmatpush.msra.mxu0 0.0
        %1712 = vmatpush.msra.mxu0 %v1689
        %1713 = vmatmul.f32.gmra.mxu0 %v1692
        %v1714 = vpop.f32.mrf.mxu0
        %v1715 = vadd.f32 0.0, %v1714
        %1716 = vmatmul.f32.gmra.mxu0 %v1695
        %v1717 = vpop.f32.mrf.mxu0
        %v1718 = vadd.f32 0.0, %v1717
        %1719 = vdwg.mxu0
        %v1720 = vld [vmem:[%s4] sm:$0xff]
        %v1721 = vld [vmem:[%s4 + $0x8] sm:$0xff]
        %1724 = vrot.lane.b32.xlu0 %v1720, 1
        %v1725 = vpop.permute.xlu0 %1724
        %1726 = vrot.lane.b32.xlu0 %v1721, 1
        %v1727 = vpop.permute.xlu0 %1726
        %v1730 = vmul.f32 %v1715, %v1725
        %v1731 = vmul.f32 %v1718, %v1727
        %v1732 = vsub.f32 %v1555, %v1715
        %v1733 = vsub.f32 %v1556, %v1718
        %1736 = vrot.lane.b32.xlu0 %v1730, 127
        %v1737 = vpop.permute.xlu0 %1736
        %1738 = vrot.lane.b32.xlu0 %v1731, 127
        %v1739 = vpop.permute.xlu0 %1738
        %v1742 = vmul.f32 %v1732, %v1737
        %v1743 = vmul.f32 %v1733, %v1739
        %v1744 = vld [vmem:[%s5] sm:$0xff]
        %v1745 = vld [vmem:[%s5 + $0x8] sm:$0xff]
        %v1746 = vadd.f32 %v1742, %v1744
        %v1747 = vadd.f32 %v1743, %v1745
        %1748 = vset.pattern.permute.xlu0 1
        %1749 = vperm.xlu0 %1748, %v1730
        %v1750 = vpop.permute.xlu0 %1749
        %1752 = vset.pattern.permute.xlu0 1
        %1753 = vperm.xlu0 %1752, %v1731
        %v1754 = vpop.permute.xlu0 %1753
        %v1756 = vmul.f32 %v1539, %v1750
        %v1757 = vmul.f32 %v1540, %v1750
        %v1758 = vmul.f32 %v1541, %v1750
        %v1759 = vmul.f32 %v1542, %v1750
        %v1760 = vmul.f32 %v1543, %v1750
        %v1761 = vmul.f32 %v1544, %v1750
        %v1762 = vmul.f32 %v1545, %v1750
        %v1763 = vmul.f32 %v1546, %v1750
        %v1764 = vmul.f32 %v1547, %v1754
        %v1765 = vmul.f32 %v1548, %v1754
        %v1766 = vmul.f32 %v1549, %v1754
        %v1767 = vmul.f32 %v1550, %v1754
        %v1768 = vmul.f32 %v1551, %v1754
        %v1769 = vmul.f32 %v1552, %v1754
        %v1770 = vmul.f32 %v1553, %v1754
        %v1771 = vmul.f32 %v1554, %v1754
        %1773 = vset.pattern.permute.xlu0 0
        %1774 = vperm.xlu0 %1773, %v1746
        %v1775 = vpop.permute.xlu0 %1774
        %1778 = vset.pattern.permute.xlu0 0
        %1779 = vperm.xlu0 %1778, %v1747
        %v1780 = vpop.permute.xlu0 %1779
        %v1782 = vadd.f32 %v1756, %v1775
        %v1783 = vadd.f32 %v1757, %v1775
        %v1784 = vadd.f32 %v1758, %v1775
        %v1785 = vadd.f32 %v1759, %v1775
        %v1786 = vadd.f32 %v1760, %v1775
        %v1787 = vadd.f32 %v1761, %v1775
        %v1788 = vadd.f32 %v1762, %v1775
        %v1789 = vadd.f32 %v1763, %v1775
        %v1790 = vadd.f32 %v1764, %v1780
        %v1791 = vadd.f32 %v1765, %v1780
        %v1792 = vadd.f32 %v1766, %v1780
        %v1793 = vadd.f32 %v1767, %v1780
        %v1794 = vadd.f32 %v1768, %v1780
        %v1795 = vadd.f32 %v1769, %v1780
        %v1796 = vadd.f32 %v1770, %v1780
        %v1797 = vadd.f32 %v1771, %v1780
        %v1798 = vmax.f32 %v1782, 0.0
        %v1799 = vmax.f32 %v1783, 0.0
        %v1800 = vmax.f32 %v1784, 0.0
        %v1801 = vmax.f32 %v1785, 0.0
        %v1802 = vmax.f32 %v1786, 0.0
        %v1803 = vmax.f32 %v1787, 0.0
        %v1804 = vmax.f32 %v1788, 0.0
        %v1805 = vmax.f32 %v1789, 0.0
        %v1806 = vmax.f32 %v1790, 0.0
        %v1807 = vmax.f32 %v1791, 0.0
        %v1808 = vmax.f32 %v1792, 0.0
        %v1809 = vmax.f32 %v1793, 0.0
        %v1810 = vmax.f32 %v1794, 0.0
        %v1811 = vmax.f32 %v1795, 0.0
        %v1812 = vmax.f32 %v1796, 0.0
        %v1813 = vmax.f32 %v1797, 0.0
        %v1814 = vpack.c.bf16 %v1799, %v1798
        %v1815 = vpack.c.bf16 %v1801, %v1800
        %v1816 = vpack.c.bf16 %v1803, %v1802
        %v1817 = vpack.c.bf16 %v1805, %v1804
        %v1818 = vpack.c.bf16 %v1807, %v1806
        %v1819 = vpack.c.bf16 %v1809, %v1808
        %v1820 = vpack.c.bf16 %v1811, %v1810
        %v1821 = vpack.c.bf16 %v1813, %v1812
        %1822 = vst [vmem:[%s363] sm:$0xff] %v1814
        %1823 = vst [vmem:[%s363 + $0x8] sm:$0xff] %v1815
        %1824 = vst [vmem:[%s363 + $0x10] sm:$0xff] %v1816
        %1825 = vst [vmem:[%s363 + $0x18] sm:$0xff] %v1817
        %1826 = vst [vmem:[%s363 + $0x20] sm:$0xff] %v1818
        %1827 = vst [vmem:[%s363 + $0x28] sm:$0xff] %v1819
        %1828 = vst [vmem:[%s363 + $0x30] sm:$0xff] %v1820
        %1829 = vst [vmem:[%s363 + $0x38] sm:$0xff] %v1821
        %s1830 = sand.u32 %s214, 1
        %s1831 = scalar_lea.sflag [#allocation5], %s1830
        %s1832 = sand.u32 %s214, 1
        %s1833 = smul.addr %s1832, 64
        %s1834 = scalar_lea.vmem [#allocation8], %s1833
        // Predicated region
        $region61: #{tpu_custom_call.1} parent=51 // pred_check
          %p1835 = pneg %p224
        $region62: #{tpu_custom_call.1} parent=51 // pred_check_branch
          %1837 = sbr.rel (%p1835) target = $region64
        $region63: #{tpu_custom_call.1} parent=51 // pred_region
          %1839 = vsyncadd %s1831, 0
          %s1840 = smul.addr %s28, 16
          %s1841 = smul.addr %s1840, 4
          %s1842 = scalar_lea.hbm %s8, %s1841
          %s1843 = sshll.u32 %s1834, 4
          %s1844 = int_to_ptr.vmem [resolvable:$true] %s1843
          %s1845 = sshll.u32 %s1842, 4
          %s1846 = int_to_ptr.hbm [resolvable:$true] %s1845
          %1851 = dma.vmem_to_hbm [thread:$0]  %s1844, 1024, %s1846, %s1831, 512, 512, 32
        $region64: #{tpu_custom_call.1} parent=51 // pred_fallthru
          _
      $region52: #{tpu_custom_call.1} parent=5 // pred_fallthru
        _
      %p1852 = scmp.le.s32.totalorder 2, %s23
      // Predicated region
      $region65: #{tpu_custom_call.1} parent=5 // pred_check
        %p1853 = pneg %p1852
      $region66: #{tpu_custom_call.1} parent=5 // pred_check_branch
        %1855 = sbr.rel (%p1853) target = $region68
      $region67: #{tpu_custom_call.1} parent=5 // pred_region
        %s1856 = ssub.s32 %s23, 2
        // Predicated region
        $region69: #{tpu_custom_call.1} parent=67 // pred_check
          %p1857 = pneg %p230
        $region70: #{tpu_custom_call.1} parent=67 // pred_check_branch
          %1859 = sbr.rel (%p1857) target = $region72
        $region71: #{tpu_custom_call.1} parent=67 // pred_region
          %s1860 = sand.u32 %s215, 1
          %s1861 = scalar_lea.sflag [#allocation5], %s1860
          %s1862 = sand.u32 %s215, 1
          %s1863 = smul.addr %s1862, 64
          %s1864 = scalar_lea.vmem [#allocation8], %s1863
          %1866 = dma.done %s1861, 1024
        $region72: #{tpu_custom_call.1} parent=67 // pred_fallthru
          _
      $region68: #{tpu_custom_call.1} parent=5 // pred_fallthru
        _
    $region6: #{tpu_custom_call.1} parent=1 // loop_footer
      %s27 = sadd.s32 1, %s23
    $region7: #{tpu_custom_call.1} parent=1 // loop_footer_branch
      %22 = sbr.rel target = $region3
    $region8: #{tpu_custom_call.1} parent=1 // loop_exit
      _
    %1867 = vsyncpa [#allocation4], 1
    %s1868 = scalar_lea.sflag [#allocation4], 1
    %1869 = vsyncpa %s1868, 1
    %1870 = vsyncpa [#allocation7], 1
    %s1871 = scalar_lea.sflag [#allocation7], 1
    %1872 = vsyncpa %s1871, 1
    %1873 = vsyncpa [#allocation5], 1
    %s1874 = scalar_lea.sflag [#allocation5], 1
    %1875 = vsyncpa %s1874, 1

</llo_original>
